<compile_context>
chip_gen: v6e
topology: v6e:2x2x1
jax: 0.10.0
libtpu: 0.0.40
codegen_flags: <defaults>
</compile_context>

<pallas_src>
import functools

import jax
import jax.numpy as jnp
from jax.experimental import pallas as pl
from jax.experimental.pallas import tpu as pltpu


_LANE = 128
_ROW_TILE_TARGET = 512
_TILE_CANDS = (1024, 768, 512, 384, 256, 128, 64, 32, 16, 8)


def _round_up(v, m):
    return ((v + m - 1) // m) * m


def _pad2d(a, rows, cols):
    r, c = a.shape
    if r == rows and c == cols:
        return a
    return jnp.pad(a, ((0, rows - r), (0, cols - c)))


@functools.lru_cache(maxsize=1)
def _vmem_budget():
    """Generation-aware (scoped vmem_limit_bytes, per-call tile byte budget)."""
    try:
        cap = int(pltpu.get_tpu_info().vmem_capacity_bytes)
    except Exception:
        cap = 64 * 1024 * 1024  # conservative fallback (v7x-sized VMEM)
    # ~48 MiB on v7x (64 MiB/TC), ~96-100 MiB on v5e/v6e (128 MiB).
    limit = min(cap * 3 // 4, 100 * 1024 * 1024)
    budget = limit * 5 // 6  # headroom for compiler-internal scratch
    return limit, budget


def _compiler_params(dims):
    limit, _ = _vmem_budget()
    return pltpu.CompilerParams(dimension_semantics=dims, vmem_limit_bytes=limit)


def _tile_candidates(n_pad):
    cands = {t for t in _TILE_CANDS if t <= n_pad and n_pad % t == 0}
    if n_pad <= 1024:
        cands.add(n_pad)
    return sorted(cands, reverse=True)


def _search_tm_tk(n_pad, cost_fn, budget):
    """Pick (tm, tk) fitting `budget`, preferring balanced, large tiles."""
    cands = _tile_candidates(n_pad)
    best = None
    for tm in cands:
        for tk in cands:
            if cost_fn(tm, tk) > budget:
                continue
            key = (min(tm, tk), tm + tk, tm)
            if best is None or key > best[0]:
                best = (key, (tm, tk))
    if best is None:
        return cands[-1], cands[-1]
    return best[1]


def _search_tm(n_pad, cost_fn, budget):
    cands = _tile_candidates(n_pad)
    for tm in cands:
        if cost_fn(tm) <= budget:
            return tm
    return cands[-1]


# ----------------------------- kernels ---------------------------------------


def _spmm_linear_kernel(adj_ref, x_ref, wt_ref, b_ref, o_ref, acc_ref, *, apply_relu):
    """Linear-last path: out_tile = epilogue( (sum_k adj[i,k] @ x[k]) @ W.T + b )."""
    k = pl.program_id(1)

    @pl.when(k == 0)
    def _():
        acc_ref[...] = jnp.zeros_like(acc_ref)

    acc_ref[...] += jnp.dot(adj_ref[...], x_ref[...], preferred_element_type=jnp.float32)

    @pl.when(k == pl.num_programs(1) - 1)
    def _():
        out = jnp.dot(acc_ref[...], wt_ref[...], preferred_element_type=jnp.float32)
        out = out + b_ref[...]
        if apply_relu:
            out = jnp.maximum(out, 0.0)
        o_ref[...] = out.astype(o_ref.dtype)


def _spmm_bias_kernel(adj_ref, z_ref, b_ref, o_ref, acc_ref, *, apply_relu):
    """Linear-first path: out_tile = epilogue( sum_k adj[i,k] @ z[k] + b )."""
    k = pl.program_id(1)

    @pl.when(k == 0)
    def _():
        acc_ref[...] = jnp.zeros_like(acc_ref)

    acc_ref[...] += jnp.dot(adj_ref[...], z_ref[...], preferred_element_type=jnp.float32)

    @pl.when(k == pl.num_programs(1) - 1)
    def _():
        out = acc_ref[...] + b_ref[...]
        if apply_relu:
            out = jnp.maximum(out, 0.0)
        o_ref[...] = out.astype(o_ref.dtype)


def _linear_kernel(x_ref, wt_ref, o_ref):
    # z_tile = x_tile @ W.T   (bias is added after the SpMM; see _spmm_bias_kernel)
    o_ref[...] = jnp.dot(
        x_ref[...], wt_ref[...], preferred_element_type=jnp.float32
    ).astype(o_ref.dtype)


# ----------------------------- pallas_call wrappers ---------------------------


def _call_spmm_linear(adj_c, x_c, wt_f32, b_f32, *, apply_relu, out_dtype):
    n_pad = adj_c.shape[0]
    c_in_pad, c_out_pad = wt_f32.shape
    isz = adj_c.dtype.itemsize
    xsz = x_c.dtype.itemsize
    osz = jnp.dtype(out_dtype).itemsize
    _, budget = _vmem_budget()

    def cost(tm, tk):
        # Pallas double-buffers every BlockSpec operand, including "resident" ones.
        return (2 * tm * tk * isz                  # adj slab (streamed)
                + 2 * tk * c_in_pad * xsz          # x k-slab (streamed)
                + 2 * c_in_pad * c_out_pad * 4     # W.T
                + 2 * c_out_pad * 4                # bias
                + 2 * tm * c_out_pad * osz         # out tile
                + tm * c_in_pad * 4)               # f32 accumulator scratch

    tm, tk = _search_tm_tk(n_pad, cost, budget)
    kernel = functools.partial(_spmm_linear_kernel, apply_relu=apply_relu)
    flops = 2 * n_pad * n_pad * c_in_pad + 2 * n_pad * c_in_pad * c_out_pad
    bytes_accessed = (n_pad * n_pad * isz + n_pad * c_in_pad * xsz
                      + c_in_pad * c_out_pad * 4 + n_pad * c_out_pad * osz)
    return pl.pallas_call(
        kernel,
        out_shape=jax.ShapeDtypeStruct((n_pad, c_out_pad), out_dtype),
        grid=(n_pad // tm, n_pad // tk),
        in_specs=[
            pl.BlockSpec((tm, tk), lambda i, k: (i, k)),               # adj tile
            pl.BlockSpec((tk, c_in_pad), lambda i, k: (k, 0)),         # x k-slab
            pl.BlockSpec((c_in_pad, c_out_pad), lambda i, k: (0, 0)),  # W.T
            pl.BlockSpec((1, c_out_pad), lambda i, k: (0, 0)),         # bias
        ],
        out_specs=pl.BlockSpec((tm, c_out_pad), lambda i, k: (i, 0)),
        scratch_shapes=[pltpu.VMEM((tm, c_in_pad), jnp.float32)],
        compiler_params=_compiler_params(("parallel", "arbitrary")),
        cost_estimate=pl.CostEstimate(
            flops=flops, transcendentals=0, bytes_accessed=bytes_accessed),
    )(adj_c, x_c, wt_f32, b_f32)


def _call_spmm_bias(adj_c, z_c, b_f32, *, apply_relu, out_dtype):
    n_pad = adj_c.shape[0]
    c_out_pad = z_c.shape[1]
    isz = adj_c.dtype.itemsize
    zsz = z_c.dtype.itemsize
    osz = jnp.dtype(out_dtype).itemsize
    _, budget = _vmem_budget()

    def cost(tm, tk):
        return (2 * tm * tk * isz
                + 2 * tk * c_out_pad * zsz
                + 2 * c_out_pad * 4
                + 2 * tm * c_out_pad * osz
                + tm * c_out_pad * 4)

    tm, tk = _search_tm_tk(n_pad, cost, budget)
    kernel = functools.partial(_spmm_bias_kernel, apply_relu=apply_relu)
    flops = 2 * n_pad * n_pad * c_out_pad
    bytes_accessed = (n_pad * n_pad * isz + n_pad * c_out_pad * zsz
                      + n_pad * c_out_pad * osz)
    return pl.pallas_call(
        kernel,
        out_shape=jax.ShapeDtypeStruct((n_pad, c_out_pad), out_dtype),
        grid=(n_pad // tm, n_pad // tk),
        in_specs=[
            pl.BlockSpec((tm, tk), lambda i, k: (i, k)),          # adj tile
            pl.BlockSpec((tk, c_out_pad), lambda i, k: (k, 0)),   # z k-slab
            pl.BlockSpec((1, c_out_pad), lambda i, k: (0, 0)),    # bias
        ],
        out_specs=pl.BlockSpec((tm, c_out_pad), lambda i, k: (i, 0)),
        scratch_shapes=[pltpu.VMEM((tm, c_out_pad), jnp.float32)],
        compiler_params=_compiler_params(("parallel", "arbitrary")),
        cost_estimate=pl.CostEstimate(
            flops=flops, transcendentals=0, bytes_accessed=bytes_accessed),
    )(adj_c, z_c, b_f32)


def _call_linear(x_c, wt_f32, *, out_dtype):
    n_pad, c_in_pad = x_c.shape
    c_out_pad = wt_f32.shape[1]
    xsz = x_c.dtype.itemsize
    osz = jnp.dtype(out_dtype).itemsize
    _, budget = _vmem_budget()

    def cost(tm):
        return (2 * tm * c_in_pad * xsz
                + 2 * c_in_pad * c_out_pad * 4
                + 2 * tm * c_out_pad * osz)

    tm = _search_tm(n_pad, cost, budget)
    return pl.pallas_call(
        _linear_kernel,
        out_shape=jax.ShapeDtypeStruct((n_pad, c_out_pad), out_dtype),
        grid=(n_pad // tm,),
        in_specs=[
            pl.BlockSpec((tm, c_in_pad), lambda i: (i, 0)),
            pl.BlockSpec((c_in_pad, c_out_pad), lambda i: (0, 0)),
        ],
        out_specs=pl.BlockSpec((tm, c_out_pad), lambda i: (i, 0)),
        compiler_params=_compiler_params(("parallel",)),
    )(x_c, wt_f32)


# ----------------------------- GCN model --------------------------------------


def gcn_layer(h, adj_c, wt_f32, b_f32, *, apply_relu, compute_dtype, out_dtype):
    """One GCN layer on lane-dense padded operands: relu((adj @ h) @ W.T + b).

    h:      [N_pad, C_in_pad]        features (any float dtype; cast to compute_dtype)
    adj_c:  [N_pad, N_pad]           padded adjacency, already in compute_dtype (hoisted)
    wt_f32: [C_in_pad, C_out_pad]    pre-transposed, zero-padded weight (W.T), f32
    b_f32:  [1, C_out_pad]           zero-padded bias, f32
    Returns [N_pad, C_out_pad] in out_dtype.
    """
    c_in_pad, c_out_pad = wt_f32.shape
    h_c = h.astype(compute_dtype)
    if c_out_pad < c_in_pad:
        # Linear first: the dominant N^2 SpMM then streams the narrower channel width.
        z = _call_linear(h_c, wt_f32, out_dtype=compute_dtype)
        return _call_spmm_bias(adj_c, z, b_f32, apply_relu=apply_relu, out_dtype=out_dtype)
    return _call_spmm_linear(adj_c, h_c, wt_f32, b_f32,
                             apply_relu=apply_relu, out_dtype=out_dtype)


def init_linear_params(key, in_channels, out_channels):
    """Deterministic init mimicking torch.nn.Linear defaults (uniform +-1/sqrt(fan_in))."""
    kw, kb = jax.random.split(key)
    bound = 1.0 / jnp.sqrt(jnp.float32(in_channels))
    weight = jax.random.uniform(
        kw, (out_channels, in_channels), jnp.float32, minval=-bound, maxval=bound)
    bias = jax.random.uniform(
        kb, (out_channels,), jnp.float32, minval=-bound, maxval=bound)
    return weight, bias


def make_gcn_params(key, in_channels, hidden_channels, out_channels, num_layers):
    dims = [in_channels] + [hidden_channels] * (num_layers - 1) + [out_channels]
    params = []
    keys = jax.random.split(key, num_layers)
    for li in range(num_layers):
        params.append(init_linear_params(keys[li], dims[li], dims[li + 1]))
    return params


def gcn_forward(x, adj, params, dropout_p=0.5, training=False,
                compute_dtype=jnp.bfloat16):
    """GCN.forward: all layers but the last use ReLU (+ dropout only in training)."""
    del dropout_p  # F.dropout is identity when training=False
    assert not training, "only inference-mode forward is implemented"
    # TODO(synk): training-mode dropout (pltpu.prng_random_bits mask) not implemented.
    n, c_in = x.shape
    n_pad = _round_up(n, _ROW_TILE_TARGET if n >= _ROW_TILE_TARGET else _LANE)
    # Hoisted: pad + cast the N^2 adjacency exactly once, shared by every layer.
    adj_c = _pad2d(adj, n_pad, n_pad).astype(compute_dtype)
    h = _pad2d(x, n_pad, _round_up(c_in, _LANE))
    num_layers = len(params)
    for li, (w, b) in enumerate(params):
        c_out, c_in_l = w.shape
        c_in_pad = _round_up(c_in_l, _LANE)
        c_out_pad = _round_up(c_out, _LANE)
        assert h.shape[1] == c_in_pad
        wt_f32 = _pad2d(w.T.astype(jnp.float32), c_in_pad, c_out_pad)   # [C_in_pad, C_out_pad]
        b_f32 = _pad2d(b.reshape(1, -1).astype(jnp.float32), 1, c_out_pad)
        last = li == num_layers - 1
        h = gcn_layer(h, adj_c, wt_f32, b_f32,
                      apply_relu=not last,
                      compute_dtype=compute_dtype,
                      out_dtype=jnp.float32 if last else compute_dtype)
    c_out_final = params[-1][0].shape[0]
    return h[:n, :c_out_final]


if __name__ == "__main__":
    key = jax.random.PRNGKey(0)
    k_x, k_adj, k_params = jax.random.split(key, 3)

    # Small, module-consistent shapes; N=300 exercises a padded multi-candidate row grid
    # (N_pad=384), hidden=256 exercises both matmul-ordering paths (128->256 and 256->128).
    N = 300
    in_channels, hidden_channels, out_channels = 16, 256, 8
    num_layers = 3
    dropout = 0.5

    x = jax.random.normal(k_x, (N, in_channels), jnp.float32)
    # Dense "sparse" adjacency: ~10% nonzeros, row-normalized (typical GCN usage).
    adj_dense = jax.random.uniform(k_adj, (N, N), jnp.float32)
    adj = jnp.where(adj_dense > 0.9, adj_dense, 0.0)
    adj = adj / jnp.maximum(adj.sum(axis=1, keepdims=True), 1e-6)

    params = make_gcn_params(
        k_params, in_channels, hidden_channels, out_channels, num_layers)

    # Reference in plain JAX (f32, same math).
    ref = x
    for (w, b) in params[:-1]:
        ref = jnp.maximum(adj @ ref @ w.T + b, 0.0)
    w, b = params[-1]
    ref = adj @ ref @ w.T + b

    # Exact-math check with the f32 stream.
    out_f32 = gcn_forward(x, adj, params, dropout_p=dropout, training=False,
                          compute_dtype=jnp.float32)
    jax.block_until_ready(out_f32)
    assert out_f32.shape == (N, out_channels)
    assert jnp.allclose(out_f32, ref, atol=2e-3, rtol=2e-3), float(
        jnp.max(jnp.abs(out_f32 - ref)))

    # Default perf path: bf16 adj / intermediates, f32 MXU accumulation (looser tolerance).
    out = gcn_forward(x, adj, params, dropout_p=dropout, training=False)
    jax.block_until_ready(out)
    assert out.shape == (N, out_channels)
    assert jnp.allclose(out, ref, atol=5e-2, rtol=5e-2), float(
        jnp.max(jnp.abs(out - ref)))

    print("KERNEL_OK")
</pallas_src>

<mosaic_0001>
module attributes {stable_mosaic.version = 11 : i64} {
  func.func @_spmm_linear_kernel(%arg0: i32, %arg1: i32, %arg2: memref<384x384xf32, #tpu.memory_space<vmem>>, %arg3: memref<384x128xf32, #tpu.memory_space<vmem>>, %arg4: memref<128x256xf32, #tpu.memory_space<vmem>>, %arg5: memref<1x256xf32, #tpu.memory_space<vmem>>, %arg6: memref<384x256xf32, #tpu.memory_space<vmem>>, %arg7: memref<384x128xf32, #tpu.memory_space<vmem>>) attributes {dimension_semantics = [#tpu.dimension_semantics<parallel>, #tpu.dimension_semantics<arbitrary>], iteration_bounds = array<i64: 1, 1>, scalar_prefetch = 0 : i64, scratch_operands = 1 : i64, tpu.core_type = #tpu.core_type<tc>, window_params = [{transform_indices = @transform_0, window_bounds = array<i64: 384, 384>}, {transform_indices = @transform_1, window_bounds = array<i64: 384, 128>}, {pipeline_mode = #tpu.pipeline_mode<synchronous>, transform_indices = @transform_2, window_bounds = array<i64: 128, 256>}, {pipeline_mode = #tpu.pipeline_mode<synchronous>, transform_indices = @transform_3, window_bounds = array<i64: 1, 256>}, {transform_indices = @transform_4, window_bounds = array<i64: 384, 256>}]} {
    %c0_i32 = arith.constant 0 : i32
    %0 = arith.cmpi eq, %arg1, %c0_i32 : i32
    %1 = arith.extui %0 : i1 to i32
    %c0_i32_0 = arith.constant 0 : i32
    %2 = arith.cmpi ne, %1, %c0_i32_0 : i32
    scf.if %2 {
      %cst_10 = arith.constant 0.000000e+00 : f32
      %12 = vector.broadcast %cst_10 : f32 to vector<384x128xf32>
      %c0_11 = arith.constant 0 : index
      %c0_12 = arith.constant 0 : index
      %13 = vector.load %arg7[%c0_11, %c0_12] : memref<384x128xf32, #tpu.memory_space<vmem>>, vector<384x128xf32>
      tpu.vector_store %arg7[%c0_11, %c0_12], %12 {strides = array<i32>} : memref<384x128xf32, #tpu.memory_space<vmem>>, vector<384x128xf32>,
    } else {
    }
    %c0 = arith.constant 0 : index
    %c0_1 = arith.constant 0 : index
    %3 = vector.load %arg7[%c0, %c0_1] : memref<384x128xf32, #tpu.memory_space<vmem>>, vector<384x128xf32>
    %c0_2 = arith.constant 0 : index
    %c0_3 = arith.constant 0 : index
    %4 = vector.load %arg2[%c0_2, %c0_3] : memref<384x384xf32, #tpu.memory_space<vmem>>, vector<384x384xf32>
    %c0_4 = arith.constant 0 : index
    %c0_5 = arith.constant 0 : index
    %5 = vector.load %arg3[%c0_4, %c0_5] : memref<384x128xf32, #tpu.memory_space<vmem>>, vector<384x128xf32>
    %cst = arith.constant dense<0.000000e+00> : vector<384x128xf32>
    %6 = tpu.matmul %4, %5, %cst {dimension_numbers = #tpu.dot_dimension_numbers<[1], [0], [0], [1], [0, 0, 1, 1], [], []>} : vector<384x384xf32>, vector<384x128xf32>, vector<384x128xf32> -> vector<384x128xf32>
    %7 = arith.addf %3, %6 : vector<384x128xf32>
    %c0_6 = arith.constant 0 : index
    %c0_7 = arith.constant 0 : index
    %8 = vector.load %arg7[%c0_6, %c0_7] : memref<384x128xf32, #tpu.memory_space<vmem>>, vector<384x128xf32>
    tpu.vector_store %arg7[%c0_6, %c0_7], %7 {strides = array<i32>} : memref<384x128xf32, #tpu.memory_space<vmem>>, vector<384x128xf32>,
    %c0_i32_8 = arith.constant 0 : i32
    %9 = arith.cmpi eq, %arg1, %c0_i32_8 : i32
    %10 = arith.extui %9 : i1 to i32
    %c0_i32_9 = arith.constant 0 : i32
    %11 = arith.cmpi ne, %10, %c0_i32_9 : i32
    scf.if %11 {
      %c0_10 = arith.constant 0 : index
      %c0_11 = arith.constant 0 : index
      %12 = vector.load %arg7[%c0_10, %c0_11] : memref<384x128xf32, #tpu.memory_space<vmem>>, vector<384x128xf32>
      %c0_12 = arith.constant 0 : index
      %c0_13 = arith.constant 0 : index
      %13 = vector.load %arg4[%c0_12, %c0_13] : memref<128x256xf32, #tpu.memory_space<vmem>>, vector<128x256xf32>
      %cst_14 = arith.constant dense<0.000000e+00> : vector<384x256xf32>
      %14 = tpu.matmul %12, %13, %cst_14 {dimension_numbers = #tpu.dot_dimension_numbers<[1], [0], [0], [1], [0, 0, 1, 1], [], []>} : vector<384x128xf32>, vector<128x256xf32>, vector<384x256xf32> -> vector<384x256xf32>
      %c0_15 = arith.constant 0 : index
      %c0_16 = arith.constant 0 : index
      %15 = vector.load %arg5[%c0_15, %c0_16] : memref<1x256xf32, #tpu.memory_space<vmem>>, vector<1x256xf32>
      %16 = vector.broadcast %15 : vector<1x256xf32> to vector<384x256xf32>
      %17 = arith.addf %14, %16 : vector<384x256xf32>
      %cst_17 = arith.constant 0.000000e+00 : f32
      %18 = vector.broadcast %cst_17 : f32 to vector<384x256xf32>
      %19 = arith.maximumf %17, %18 : vector<384x256xf32>
      %c0_18 = arith.constant 0 : index
      %c0_19 = arith.constant 0 : index
      %20 = vector.load %arg6[%c0_18, %c0_19] : memref<384x256xf32, #tpu.memory_space<vmem>>, vector<384x256xf32>
      tpu.vector_store %arg6[%c0_18, %c0_19], %19 {strides = array<i32>} : memref<384x256xf32, #tpu.memory_space<vmem>>, vector<384x256xf32>,
    } else {
    }
    return
  }
  func.func @transform_0(%arg0: i32, %arg1: i32) -> (i32, i32) {
    %c0_i32 = arith.constant 0 : i32
    return %arg0, %arg1 : i32, i32
  }
  func.func @transform_1(%arg0: i32, %arg1: i32) -> (i32, i32) {
    %c0_i32 = arith.constant 0 : i32
    %c0_i32_0 = arith.constant 0 : i32
    return %arg1, %c0_i32 : i32, i32
  }
  func.func @transform_2(%arg0: i32, %arg1: i32) -> (i32, i32) {
    %c0_i32 = arith.constant 0 : i32
    %c0_i32_0 = arith.constant 0 : i32
    %c0_i32_1 = arith.constant 0 : i32
    return %c0_i32, %c0_i32_0 : i32, i32
  }
  func.func @transform_3(%arg0: i32, %arg1: i32) -> (i32, i32) {
    %c0_i32 = arith.constant 0 : i32
    %c0_i32_0 = arith.constant 0 : i32
    %c0_i32_1 = arith.constant 0 : i32
    return %c0_i32, %c0_i32_0 : i32, i32
  }
  func.func @transform_4(%arg0: i32, %arg1: i32) -> (i32, i32) {
    %c0_i32 = arith.constant 0 : i32
    %c0_i32_0 = arith.constant 0 : i32
    return %arg0, %c0_i32 : i32, i32
  }
}

</mosaic_0001>

<llo_original>
// kernel: tpu_custom_call.1
$region0: #{tpu_custom_call.1}
  #allocation0 [shape = 'u32[]', space=smem, size = 0x4, offset = 0x4, fixed_abs, tag = 'smem constant byte address 0x4 - core index']
  #allocation1 [shape = 'u32[144,128]{1,0:T(1,128)}', space=vmem, size = 0x12000, scoped, tag = 'internal scratch']
  #allocation2 [shape = 'f32[384,128]{1,0:T(8,128)}', space=vmem, size = 0x30000, scoped, tag = 'scratch operand']
  %s0 = inlined_call_operand.hbm [shape: f32[384,384], index: 0, kind: input, shape index: {}]
  %s1 = inlined_call_operand.hbm [shape: f32[384,128], index: 1, kind: input, shape index: {}]
  %s2 = inlined_call_operand.hbm [shape: f32[128,256], index: 2, kind: input, shape index: {}]
  %s3 = inlined_call_operand.vmem [shape: f32[1,256], index: 3, kind: input, shape index: {}]
  %s4 = inlined_call_operand.hbm [shape: f32[384,256], index: 4, kind: output, shape index: {}]
  %s5 = sld [smem:[#allocation0]]
  $region46: #{tpu_custom_call.1} parent=0
    _
  %s7 = ssub.s32 1, %s5
  %s8 = scalar_select 0, %s7, %s5
  $region1: #{tpu_custom_call.1} parent=0
    #allocation3 [shape = 'u8[589824]{0}', space=vmem, size = 0x90000, scoped, tag = 'input window, operand 0, single buffered']
    #allocation4 [shape = 's32[1]{0}', space=sflag, size = 0x4, scoped, tag = 'scoped memory for tpu_custom_call.1']
    #allocation5 [shape = 's32[1]{0}', space=sflag, size = 0x4, scoped, tag = 'scoped memory for tpu_custom_call.1']
    #allocation6 [shape = 'u8[196608]{0}', space=vmem, size = 0x30000, scoped, tag = 'input window, operand 1, single buffered']
    #allocation7 [shape = 's32[1]{0}', space=sflag, size = 0x4, scoped, tag = 'scoped memory for tpu_custom_call.1']
    #allocation8 [shape = 'u8[131072]{0}', space=vmem, size = 0x20000, scoped, tag = 'input window, operand 2, single buffered']
    #allocation9 [shape = 'u8[393216]{0}', space=vmem, size = 0x60000, scoped, tag = 'output window, operand 0, single buffered']
    %9 = vsyncpa [#allocation4], 0
    %10 = vsyncpa [#allocation7], 0
    %11 = vsyncpa [#allocation5], 0
    // Predicated region
    $region2: #{tpu_custom_call.1} parent=1 // pred_check
      _
    $region3: #{tpu_custom_call.1} parent=1 // pred_check_branch
      %13 = sbr.rel (0) target = $region5
    $region4: #{tpu_custom_call.1} parent=1 // pred_region
      %s15 = ssub.s32 18432, 18432
      %16 = vsyncadd [#allocation4], %s15
      %s17 = sshll.u32 [#allocation3], 4
      %s18 = int_to_ptr.vmem [resolvable:$true] %s17
      %23 = dma.hbm_to_vmem [thread:$0]  %s0, 18432, %s18, [#allocation4], 384, 384, 24
    $region5: #{tpu_custom_call.1} parent=1 // pred_fallthru
      _
    // Predicated region
    $region6: #{tpu_custom_call.1} parent=1 // pred_check
      _
    $region7: #{tpu_custom_call.1} parent=1 // pred_check_branch
      %25 = sbr.rel (0) target = $region9
    $region8: #{tpu_custom_call.1} parent=1 // pred_region
      %s27 = ssub.s32 6144, 6144
      %28 = vsyncadd [#allocation7], %s27
      %s29 = sshll.u32 [#allocation6], 4
      %s30 = int_to_ptr.vmem [resolvable:$true] %s29
      %35 = dma.hbm_to_vmem [thread:$0]  %s1, 6144, %s30, [#allocation7], 128, 128, 8
    $region9: #{tpu_custom_call.1} parent=1 // pred_fallthru
      _
    // Predicated region
    $region10: #{tpu_custom_call.1} parent=1 // pred_check
      _
    $region11: #{tpu_custom_call.1} parent=1 // pred_check_branch
      %37 = sbr.rel (0) target = $region13
    $region12: #{tpu_custom_call.1} parent=1 // pred_region
      %s39 = ssub.s32 4096, 4096
      %40 = vsyncadd [#allocation7], %s39
      %s41 = sshll.u32 [#allocation8], 4
      %s42 = int_to_ptr.vmem [resolvable:$true] %s41
      %47 = dma.hbm_to_vmem [thread:$0]  %s2, 4096, %s42, [#allocation7], 256, 256, 16
    $region13: #{tpu_custom_call.1} parent=1 // pred_fallthru
      _
    // Predicated region
    $region14: #{tpu_custom_call.1} parent=1 // pred_check
      _
    $region15: #{tpu_custom_call.1} parent=1 // pred_check_branch
      %49 = sbr.rel (0) target = $region17
    $region16: #{tpu_custom_call.1} parent=1 // pred_region
      _
    $region17: #{tpu_custom_call.1} parent=1 // pred_fallthru
      _
    // Predicated region
    $region18: #{tpu_custom_call.1} parent=1 // pred_check
      _
    $region19: #{tpu_custom_call.1} parent=1 // pred_check_branch
      %51 = sbr.rel (0) target = $region21
    $region20: #{tpu_custom_call.1} parent=1 // pred_region
      %52 = dma.done [#allocation4], 18432
    $region21: #{tpu_custom_call.1} parent=1 // pred_fallthru
      _
    // Predicated region
    $region22: #{tpu_custom_call.1} parent=1 // pred_check
      _
    $region23: #{tpu_custom_call.1} parent=1 // pred_check_branch
      %54 = sbr.rel (0) target = $region25
    $region24: #{tpu_custom_call.1} parent=1 // pred_region
      %55 = dma.done [#allocation7], 6144
    $region25: #{tpu_custom_call.1} parent=1 // pred_fallthru
      _
    // Predicated region
    $region26: #{tpu_custom_call.1} parent=1 // pred_check
      _
    $region27: #{tpu_custom_call.1} parent=1 // pred_check_branch
      %57 = sbr.rel (0) target = $region29
    $region28: #{tpu_custom_call.1} parent=1 // pred_region
      %58 = dma.done [#allocation7], 4096
    $region29: #{tpu_custom_call.1} parent=1 // pred_fallthru
      _
    %p59 = scmp.eq.s32.totalorder 0, 0
    // Predicated region
    $region30: #{tpu_custom_call.1} parent=1 // pred_check
      %p60 = pneg %p59
    $region31: #{tpu_custom_call.1} parent=1 // pred_check_branch
      %62 = sbr.rel (%p60) target = $region33
    $region32: #{tpu_custom_call.1} parent=1 // pred_region
      %63 = vst [vmem:[#allocation2] sm:$0xff] 0.0
      %64 = vst [vmem:[#allocation2 + $0x8] sm:$0xff] 0.0
      %65 = vst [vmem:[#allocation2 + $0x10] sm:$0xff] 0.0
      %66 = vst [vmem:[#allocation2 + $0x18] sm:$0xff] 0.0
      %67 = vst [vmem:[#allocation2 + $0x20] sm:$0xff] 0.0
      %68 = vst [vmem:[#allocation2 + $0x28] sm:$0xff] 0.0
      %69 = vst [vmem:[#allocation2 + $0x30] sm:$0xff] 0.0
      %70 = vst [vmem:[#allocation2 + $0x38] sm:$0xff] 0.0
      %71 = vst [vmem:[#allocation2 + $0x40] sm:$0xff] 0.0
      %72 = vst [vmem:[#allocation2 + $0x48] sm:$0xff] 0.0
      %73 = vst [vmem:[#allocation2 + $0x50] sm:$0xff] 0.0
      %74 = vst [vmem:[#allocation2 + $0x58] sm:$0xff] 0.0
      %75 = vst [vmem:[#allocation2 + $0x60] sm:$0xff] 0.0
      %76 = vst [vmem:[#allocation2 + $0x68] sm:$0xff] 0.0
      %77 = vst [vmem:[#allocation2 + $0x70] sm:$0xff] 0.0
      %78 = vst [vmem:[#allocation2 + $0x78] sm:$0xff] 0.0
      %79 = vst [vmem:[#allocation2 + $0x80] sm:$0xff] 0.0
      %80 = vst [vmem:[#allocation2 + $0x88] sm:$0xff] 0.0
      %81 = vst [vmem:[#allocation2 + $0x90] sm:$0xff] 0.0
      %82 = vst [vmem:[#allocation2 + $0x98] sm:$0xff] 0.0
      %83 = vst [vmem:[#allocation2 + $0xa0] sm:$0xff] 0.0
      %84 = vst [vmem:[#allocation2 + $0xa8] sm:$0xff] 0.0
      %85 = vst [vmem:[#allocation2 + $0xb0] sm:$0xff] 0.0
      %86 = vst [vmem:[#allocation2 + $0xb8] sm:$0xff] 0.0
      %87 = vst [vmem:[#allocation2 + $0xc0] sm:$0xff] 0.0
      %88 = vst [vmem:[#allocation2 + $0xc8] sm:$0xff] 0.0
      %89 = vst [vmem:[#allocation2 + $0xd0] sm:$0xff] 0.0
      %90 = vst [vmem:[#allocation2 + $0xd8] sm:$0xff] 0.0
      %91 = vst [vmem:[#allocation2 + $0xe0] sm:$0xff] 0.0
      %92 = vst [vmem:[#allocation2 + $0xe8] sm:$0xff] 0.0
      %93 = vst [vmem:[#allocation2 + $0xf0] sm:$0xff] 0.0
      %94 = vst [vmem:[#allocation2 + $0xf8] sm:$0xff] 0.0
      %95 = vst [vmem:[#allocation2 + $0x100] sm:$0xff] 0.0
      %96 = vst [vmem:[#allocation2 + $0x108] sm:$0xff] 0.0
      %97 = vst [vmem:[#allocation2 + $0x110] sm:$0xff] 0.0
      %98 = vst [vmem:[#allocation2 + $0x118] sm:$0xff] 0.0
      %99 = vst [vmem:[#allocation2 + $0x120] sm:$0xff] 0.0
      %100 = vst [vmem:[#allocation2 + $0x128] sm:$0xff] 0.0
      %101 = vst [vmem:[#allocation2 + $0x130] sm:$0xff] 0.0
      %102 = vst [vmem:[#allocation2 + $0x138] sm:$0xff] 0.0
      %103 = vst [vmem:[#allocation2 + $0x140] sm:$0xff] 0.0
      %104 = vst [vmem:[#allocation2 + $0x148] sm:$0xff] 0.0
      %105 = vst [vmem:[#allocation2 + $0x150] sm:$0xff] 0.0
      %106 = vst [vmem:[#allocation2 + $0x158] sm:$0xff] 0.0
      %107 = vst [vmem:[#allocation2 + $0x160] sm:$0xff] 0.0
      %108 = vst [vmem:[#allocation2 + $0x168] sm:$0xff] 0.0
      %109 = vst [vmem:[#allocation2 + $0x170] sm:$0xff] 0.0
      %110 = vst [vmem:[#allocation2 + $0x178] sm:$0xff] 0.0
    $region33: #{tpu_custom_call.1} parent=1 // pred_fallthru
      _
    %v111 = vld [vmem:[#allocation2] sm:$0xff]
    %v112 = vld [vmem:[#allocation2 + $0x8] sm:$0xff]
    %v113 = vld [vmem:[#allocation2 + $0x10] sm:$0xff]
    %v114 = vld [vmem:[#allocation2 + $0x18] sm:$0xff]
    %v115 = vld [vmem:[#allocation2 + $0x20] sm:$0xff]
    %v116 = vld [vmem:[#allocation2 + $0x28] sm:$0xff]
    %v117 = vld [vmem:[#allocation2 + $0x30] sm:$0xff]
    %v118 = vld [vmem:[#allocation2 + $0x38] sm:$0xff]
    %v119 = vld [vmem:[#allocation2 + $0x40] sm:$0xff]
    %v120 = vld [vmem:[#allocation2 + $0x48] sm:$0xff]
    %v121 = vld [vmem:[#allocation2 + $0x50] sm:$0xff]
    %v122 = vld [vmem:[#allocation2 + $0x58] sm:$0xff]
    %v123 = vld [vmem:[#allocation2 + $0x60] sm:$0xff]
    %v124 = vld [vmem:[#allocation2 + $0x68] sm:$0xff]
    %v125 = vld [vmem:[#allocation2 + $0x70] sm:$0xff]
    %v126 = vld [vmem:[#allocation2 + $0x78] sm:$0xff]
    %v127 = vld [vmem:[#allocation2 + $0x80] sm:$0xff]
    %v128 = vld [vmem:[#allocation2 + $0x88] sm:$0xff]
    %v129 = vld [vmem:[#allocation2 + $0x90] sm:$0xff]
    %v130 = vld [vmem:[#allocation2 + $0x98] sm:$0xff]
    %v131 = vld [vmem:[#allocation2 + $0xa0] sm:$0xff]
    %v132 = vld [vmem:[#allocation2 + $0xa8] sm:$0xff]
    %v133 = vld [vmem:[#allocation2 + $0xb0] sm:$0xff]
    %v134 = vld [vmem:[#allocation2 + $0xb8] sm:$0xff]
    %v135 = vld [vmem:[#allocation2 + $0xc0] sm:$0xff]
    %v136 = vld [vmem:[#allocation2 + $0xc8] sm:$0xff]
    %v137 = vld [vmem:[#allocation2 + $0xd0] sm:$0xff]
    %v138 = vld [vmem:[#allocation2 + $0xd8] sm:$0xff]
    %v139 = vld [vmem:[#allocation2 + $0xe0] sm:$0xff]
    %v140 = vld [vmem:[#allocation2 + $0xe8] sm:$0xff]
    %v141 = vld [vmem:[#allocation2 + $0xf0] sm:$0xff]
    %v142 = vld [vmem:[#allocation2 + $0xf8] sm:$0xff]
    %v143 = vld [vmem:[#allocation2 + $0x100] sm:$0xff]
    %v144 = vld [vmem:[#allocation2 + $0x108] sm:$0xff]
    %v145 = vld [vmem:[#allocation2 + $0x110] sm:$0xff]
    %v146 = vld [vmem:[#allocation2 + $0x118] sm:$0xff]
    %v147 = vld [vmem:[#allocation2 + $0x120] sm:$0xff]
    %v148 = vld [vmem:[#allocation2 + $0x128] sm:$0xff]
    %v149 = vld [vmem:[#allocation2 + $0x130] sm:$0xff]
    %v150 = vld [vmem:[#allocation2 + $0x138] sm:$0xff]
    %v151 = vld [vmem:[#allocation2 + $0x140] sm:$0xff]
    %v152 = vld [vmem:[#allocation2 + $0x148] sm:$0xff]
    %v153 = vld [vmem:[#allocation2 + $0x150] sm:$0xff]
    %v154 = vld [vmem:[#allocation2 + $0x158] sm:$0xff]
    %v155 = vld [vmem:[#allocation2 + $0x160] sm:$0xff]
    %v156 = vld [vmem:[#allocation2 + $0x168] sm:$0xff]
    %v157 = vld [vmem:[#allocation2 + $0x170] sm:$0xff]
    %v158 = vld [vmem:[#allocation2 + $0x178] sm:$0xff]
    %v159 = vld [vmem:[#allocation3] sm:$0xff]
    %v160 = vld [vmem:[#allocation3 + $0x8] sm:$0xff]
    %v161 = vld [vmem:[#allocation3 + $0x10] sm:$0xff]
    %v162 = vld [vmem:[#allocation3 + $0x18] sm:$0xff]
    %v163 = vld [vmem:[#allocation3 + $0x20] sm:$0xff]
    %v164 = vld [vmem:[#allocation3 + $0x28] sm:$0xff]
    %v165 = vld [vmem:[#allocation3 + $0x30] sm:$0xff]
    %v166 = vld [vmem:[#allocation3 + $0x38] sm:$0xff]
    %v167 = vld [vmem:[#allocation3 + $0x40] sm:$0xff]
    %v168 = vld [vmem:[#allocation3 + $0x48] sm:$0xff]
    %v169 = vld [vmem:[#allocation3 + $0x50] sm:$0xff]
    %v170 = vld [vmem:[#allocation3 + $0x58] sm:$0xff]
    %v171 = vld [vmem:[#allocation3 + $0x60] sm:$0xff]
    %v172 = vld [vmem:[#allocation3 + $0x68] sm:$0xff]
    %v173 = vld [vmem:[#allocation3 + $0x70] sm:$0xff]
    %v174 = vld [vmem:[#allocation3 + $0x78] sm:$0xff]
    %v175 = vld [vmem:[#allocation3 + $0x80] sm:$0xff]
    %v176 = vld [vmem:[#allocation3 + $0x88] sm:$0xff]
    %v177 = vld [vmem:[#allocation3 + $0x90] sm:$0xff]
    %v178 = vld [vmem:[#allocation3 + $0x98] sm:$0xff]
    %v179 = vld [vmem:[#allocation3 + $0xa0] sm:$0xff]
    %v180 = vld [vmem:[#allocation3 + $0xa8] sm:$0xff]
    %v181 = vld [vmem:[#allocation3 + $0xb0] sm:$0xff]
    %v182 = vld [vmem:[#allocation3 + $0xb8] sm:$0xff]
    %v183 = vld [vmem:[#allocation3 + $0xc0] sm:$0xff]
    %v184 = vld [vmem:[#allocation3 + $0xc8] sm:$0xff]
    %v185 = vld [vmem:[#allocation3 + $0xd0] sm:$0xff]
    %v186 = vld [vmem:[#allocation3 + $0xd8] sm:$0xff]
    %v187 = vld [vmem:[#allocation3 + $0xe0] sm:$0xff]
    %v188 = vld [vmem:[#allocation3 + $0xe8] sm:$0xff]
    %v189 = vld [vmem:[#allocation3 + $0xf0] sm:$0xff]
    %v190 = vld [vmem:[#allocation3 + $0xf8] sm:$0xff]
    %v191 = vld [vmem:[#allocation3 + $0x100] sm:$0xff]
    %v192 = vld [vmem:[#allocation3 + $0x108] sm:$0xff]
    %v193 = vld [vmem:[#allocation3 + $0x110] sm:$0xff]
    %v194 = vld [vmem:[#allocation3 + $0x118] sm:$0xff]
    %v195 = vld [vmem:[#allocation3 + $0x120] sm:$0xff]
    %v196 = vld [vmem:[#allocation3 + $0x128] sm:$0xff]
    %v197 = vld [vmem:[#allocation3 + $0x130] sm:$0xff]
    %v198 = vld [vmem:[#allocation3 + $0x138] sm:$0xff]
    %v199 = vld [vmem:[#allocation3 + $0x140] sm:$0xff]
    %v200 = vld [vmem:[#allocation3 + $0x148] sm:$0xff]
    %v201 = vld [vmem:[#allocation3 + $0x150] sm:$0xff]
    %v202 = vld [vmem:[#allocation3 + $0x158] sm:$0xff]
    %v203 = vld [vmem:[#allocation3 + $0x160] sm:$0xff]
    %v204 = vld [vmem:[#allocation3 + $0x168] sm:$0xff]
    %v205 = vld [vmem:[#allocation3 + $0x170] sm:$0xff]
    %v206 = vld [vmem:[#allocation3 + $0x178] sm:$0xff]
    %v207 = vld [vmem:[#allocation3 + $0x180] sm:$0xff]
    %v208 = vld [vmem:[#allocation3 + $0x188] sm:$0xff]
    %v209 = vld [vmem:[#allocation3 + $0x190] sm:$0xff]
    %v210 = vld [vmem:[#allocation3 + $0x198] sm:$0xff]
    %v211 = vld [vmem:[#allocation3 + $0x1a0] sm:$0xff]
    %v212 = vld [vmem:[#allocation3 + $0x1a8] sm:$0xff]
    %v213 = vld [vmem:[#allocation3 + $0x1b0] sm:$0xff]
    %v214 = vld [vmem:[#allocation3 + $0x1b8] sm:$0xff]
    %v215 = vld [vmem:[#allocation3 + $0x1c0] sm:$0xff]
    %v216 = vld [vmem:[#allocation3 + $0x1c8] sm:$0xff]
    %v217 = vld [vmem:[#allocation3 + $0x1d0] sm:$0xff]
    %v218 = vld [vmem:[#allocation3 + $0x1d8] sm:$0xff]
    %v219 = vld [vmem:[#allocation3 + $0x1e0] sm:$0xff]
    %v220 = vld [vmem:[#allocation3 + $0x1e8] sm:$0xff]
    %v221 = vld [vmem:[#allocation3 + $0x1f0] sm:$0xff]
    %v222 = vld [vmem:[#allocation3 + $0x1f8] sm:$0xff]
    %v223 = vld [vmem:[#allocation3 + $0x200] sm:$0xff]
    %v224 = vld [vmem:[#allocation3 + $0x208] sm:$0xff]
    %v225 = vld [vmem:[#allocation3 + $0x210] sm:$0xff]
    %v226 = vld [vmem:[#allocation3 + $0x218] sm:$0xff]
    %v227 = vld [vmem:[#allocation3 + $0x220] sm:$0xff]
    %v228 = vld [vmem:[#allocation3 + $0x228] sm:$0xff]
    %v229 = vld [vmem:[#allocation3 + $0x230] sm:$0xff]
    %v230 = vld [vmem:[#allocation3 + $0x238] sm:$0xff]
    %v231 = vld [vmem:[#allocation3 + $0x240] sm:$0xff]
    %v232 = vld [vmem:[#allocation3 + $0x248] sm:$0xff]
    %v233 = vld [vmem:[#allocation3 + $0x250] sm:$0xff]
    %v234 = vld [vmem:[#allocation3 + $0x258] sm:$0xff]
    %v235 = vld [vmem:[#allocation3 + $0x260] sm:$0xff]
    %v236 = vld [vmem:[#allocation3 + $0x268] sm:$0xff]
    %v237 = vld [vmem:[#allocation3 + $0x270] sm:$0xff]
    %v238 = vld [vmem:[#allocation3 + $0x278] sm:$0xff]
    %v239 = vld [vmem:[#allocation3 + $0x280] sm:$0xff]
    %v240 = vld [vmem:[#allocation3 + $0x288] sm:$0xff]
    %v241 = vld [vmem:[#allocation3 + $0x290] sm:$0xff]
    %v242 = vld [vmem:[#allocation3 + $0x298] sm:$0xff]
    %v243 = vld [vmem:[#allocation3 + $0x2a0] sm:$0xff]
    %v244 = vld [vmem:[#allocation3 + $0x2a8] sm:$0xff]
    %v245 = vld [vmem:[#allocation3 + $0x2b0] sm:$0xff]
    %v246 = vld [vmem:[#allocation3 + $0x2b8] sm:$0xff]
    %v247 = vld [vmem:[#allocation3 + $0x2c0] sm:$0xff]
    %v248 = vld [vmem:[#allocation3 + $0x2c8] sm:$0xff]
    %v249 = vld [vmem:[#allocation3 + $0x2d0] sm:$0xff]
    %v250 = vld [vmem:[#allocation3 + $0x2d8] sm:$0xff]
    %v251 = vld [vmem:[#allocation3 + $0x2e0] sm:$0xff]
    %v252 = vld [vmem:[#allocation3 + $0x2e8] sm:$0xff]
    %v253 = vld [vmem:[#allocation3 + $0x2f0] sm:$0xff]
    %v254 = vld [vmem:[#allocation3 + $0x2f8] sm:$0xff]
    %v255 = vld [vmem:[#allocation3 + $0x300] sm:$0xff]
    %v256 = vld [vmem:[#allocation3 + $0x308] sm:$0xff]
    %v257 = vld [vmem:[#allocation3 + $0x310] sm:$0xff]
    %v258 = vld [vmem:[#allocation3 + $0x318] sm:$0xff]
    %v259 = vld [vmem:[#allocation3 + $0x320] sm:$0xff]
    %v260 = vld [vmem:[#allocation3 + $0x328] sm:$0xff]
    %v261 = vld [vmem:[#allocation3 + $0x330] sm:$0xff]
    %v262 = vld [vmem:[#allocation3 + $0x338] sm:$0xff]
    %v263 = vld [vmem:[#allocation3 + $0x340] sm:$0xff]
    %v264 = vld [vmem:[#allocation3 + $0x348] sm:$0xff]
    %v265 = vld [vmem:[#allocation3 + $0x350] sm:$0xff]
    %v266 = vld [vmem:[#allocation3 + $0x358] sm:$0xff]
    %v267 = vld [vmem:[#allocation3 + $0x360] sm:$0xff]
    %v268 = vld [vmem:[#allocation3 + $0x368] sm:$0xff]
    %v269 = vld [vmem:[#allocation3 + $0x370] sm:$0xff]
    %v270 = vld [vmem:[#allocation3 + $0x378] sm:$0xff]
    %v271 = vld [vmem:[#allocation3 + $0x380] sm:$0xff]
    %v272 = vld [vmem:[#allocation3 + $0x388] sm:$0xff]
    %v273 = vld [vmem:[#allocation3 + $0x390] sm:$0xff]
    %v274 = vld [vmem:[#allocation3 + $0x398] sm:$0xff]
    %v275 = vld [vmem:[#allocation3 + $0x3a0] sm:$0xff]
    %v276 = vld [vmem:[#allocation3 + $0x3a8] sm:$0xff]
    %v277 = vld [vmem:[#allocation3 + $0x3b0] sm:$0xff]
    %v278 = vld [vmem:[#allocation3 + $0x3b8] sm:$0xff]
    %v279 = vld [vmem:[#allocation3 + $0x3c0] sm:$0xff]
    %v280 = vld [vmem:[#allocation3 + $0x3c8] sm:$0xff]
    %v281 = vld [vmem:[#allocation3 + $0x3d0] sm:$0xff]
    %v282 = vld [vmem:[#allocation3 + $0x3d8] sm:$0xff]
    %v283 = vld [vmem:[#allocation3 + $0x3e0] sm:$0xff]
    %v284 = vld [vmem:[#allocation3 + $0x3e8] sm:$0xff]
    %v285 = vld [vmem:[#allocation3 + $0x3f0] sm:$0xff]
    %v286 = vld [vmem:[#allocation3 + $0x3f8] sm:$0xff]
    %v287 = vld [vmem:[#allocation3 + $0x400] sm:$0xff]
    %v288 = vld [vmem:[#allocation3 + $0x408] sm:$0xff]
    %v289 = vld [vmem:[#allocation3 + $0x410] sm:$0xff]
    %v290 = vld [vmem:[#allocation3 + $0x418] sm:$0xff]
    %v291 = vld [vmem:[#allocation3 + $0x420] sm:$0xff]
    %v292 = vld [vmem:[#allocation3 + $0x428] sm:$0xff]
    %v293 = vld [vmem:[#allocation3 + $0x430] sm:$0xff]
    %v294 = vld [vmem:[#allocation3 + $0x438] sm:$0xff]
    %v295 = vld [vmem:[#allocation3 + $0x440] sm:$0xff]
    %v296 = vld [vmem:[#allocation3 + $0x448] sm:$0xff]
    %v297 = vld [vmem:[#allocation3 + $0x450] sm:$0xff]
    %v298 = vld [vmem:[#allocation3 + $0x458] sm:$0xff]
    %v299 = vld [vmem:[#allocation3 + $0x460] sm:$0xff]
    %v300 = vld [vmem:[#allocation3 + $0x468] sm:$0xff]
    %v301 = vld [vmem:[#allocation3 + $0x470] sm:$0xff]
    %v302 = vld [vmem:[#allocation3 + $0x478] sm:$0xff]
    %v303 = vld [vmem:[#allocation6] sm:$0xff]
    %v304 = vld [vmem:[#allocation6 + $0x8] sm:$0xff]
    %v305 = vld [vmem:[#allocation6 + $0x10] sm:$0xff]
    %v306 = vld [vmem:[#allocation6 + $0x18] sm:$0xff]
    %v307 = vld [vmem:[#allocation6 + $0x20] sm:$0xff]
    %v308 = vld [vmem:[#allocation6 + $0x28] sm:$0xff]
    %v309 = vld [vmem:[#allocation6 + $0x30] sm:$0xff]
    %v310 = vld [vmem:[#allocation6 + $0x38] sm:$0xff]
    %v311 = vld [vmem:[#allocation6 + $0x40] sm:$0xff]
    %v312 = vld [vmem:[#allocation6 + $0x48] sm:$0xff]
    %v313 = vld [vmem:[#allocation6 + $0x50] sm:$0xff]
    %v314 = vld [vmem:[#allocation6 + $0x58] sm:$0xff]
    %v315 = vld [vmem:[#allocation6 + $0x60] sm:$0xff]
    %v316 = vld [vmem:[#allocation6 + $0x68] sm:$0xff]
    %v317 = vld [vmem:[#allocation6 + $0x70] sm:$0xff]
    %v318 = vld [vmem:[#allocation6 + $0x78] sm:$0xff]
    %v319 = vld [vmem:[#allocation6 + $0x80] sm:$0xff]
    %v320 = vld [vmem:[#allocation6 + $0x88] sm:$0xff]
    %v321 = vld [vmem:[#allocation6 + $0x90] sm:$0xff]
    %v322 = vld [vmem:[#allocation6 + $0x98] sm:$0xff]
    %v323 = vld [vmem:[#allocation6 + $0xa0] sm:$0xff]
    %v324 = vld [vmem:[#allocation6 + $0xa8] sm:$0xff]
    %v325 = vld [vmem:[#allocation6 + $0xb0] sm:$0xff]
    %v326 = vld [vmem:[#allocation6 + $0xb8] sm:$0xff]
    %v327 = vld [vmem:[#allocation6 + $0xc0] sm:$0xff]
    %v328 = vld [vmem:[#allocation6 + $0xc8] sm:$0xff]
    %v329 = vld [vmem:[#allocation6 + $0xd0] sm:$0xff]
    %v330 = vld [vmem:[#allocation6 + $0xd8] sm:$0xff]
    %v331 = vld [vmem:[#allocation6 + $0xe0] sm:$0xff]
    %v332 = vld [vmem:[#allocation6 + $0xe8] sm:$0xff]
    %v333 = vld [vmem:[#allocation6 + $0xf0] sm:$0xff]
    %v334 = vld [vmem:[#allocation6 + $0xf8] sm:$0xff]
    %v335 = vld [vmem:[#allocation6 + $0x100] sm:$0xff]
    %v336 = vld [vmem:[#allocation6 + $0x108] sm:$0xff]
    %v337 = vld [vmem:[#allocation6 + $0x110] sm:$0xff]
    %v338 = vld [vmem:[#allocation6 + $0x118] sm:$0xff]
    %v339 = vld [vmem:[#allocation6 + $0x120] sm:$0xff]
    %v340 = vld [vmem:[#allocation6 + $0x128] sm:$0xff]
    %v341 = vld [vmem:[#allocation6 + $0x130] sm:$0xff]
    %v342 = vld [vmem:[#allocation6 + $0x138] sm:$0xff]
    %v343 = vld [vmem:[#allocation6 + $0x140] sm:$0xff]
    %v344 = vld [vmem:[#allocation6 + $0x148] sm:$0xff]
    %v345 = vld [vmem:[#allocation6 + $0x150] sm:$0xff]
    %v346 = vld [vmem:[#allocation6 + $0x158] sm:$0xff]
    %v347 = vld [vmem:[#allocation6 + $0x160] sm:$0xff]
    %v348 = vld [vmem:[#allocation6 + $0x168] sm:$0xff]
    %v349 = vld [vmem:[#allocation6 + $0x170] sm:$0xff]
    %v350 = vld [vmem:[#allocation6 + $0x178] sm:$0xff]
    %351 = vmatprep.subr.mxu0 0.0
    %352 = vmatpush1.msra.mxu0 %v318
    %353 = vmatprep.subr.mxu0 0.0
    %354 = vmatpush1.msra.mxu0 %v317
    %355 = vmatprep.subr.mxu0 0.0
    %356 = vmatpush1.msra.mxu0 %v316
    %357 = vmatprep.subr.mxu0 0.0
    %358 = vmatpush1.msra.mxu0 %v315
    %359 = vmatprep.subr.mxu0 0.0
    %360 = vmatpush1.msra.mxu0 %v314
    %361 = vmatprep.subr.mxu0 0.0
    %362 = vmatpush1.msra.mxu0 %v313
    %363 = vmatprep.subr.mxu0 0.0
    %364 = vmatpush1.msra.mxu0 %v312
    %365 = vmatprep.subr.mxu0 0.0
    %366 = vmatpush1.msra.mxu0 %v311
    %367 = vmatprep.subr.mxu0 0.0
    %368 = vmatpush1.msra.mxu0 %v310
    %369 = vmatprep.subr.mxu0 0.0
    %370 = vmatpush1.msra.mxu0 %v309
    %371 = vmatprep.subr.mxu0 0.0
    %372 = vmatpush1.msra.mxu0 %v308
    %373 = vmatprep.subr.mxu0 0.0
    %374 = vmatpush1.msra.mxu0 %v307
    %375 = vmatprep.subr.mxu0 0.0
    %376 = vmatpush1.msra.mxu0 %v306
    %377 = vmatprep.subr.mxu0 0.0
    %378 = vmatpush1.msra.mxu0 %v305
    %379 = vmatprep.subr.mxu0 0.0
    %380 = vmatpush1.msra.mxu0 %v304
    %381 = vmatprep.subr.mxu0 0.0
    %382 = vmatpush1.msra.mxu0 %v303
    %383 = vmatprep.subr.mxu0 0.0
    %384 = vmatpush2.msra.mxu0 %v334
    %385 = vmatprep.subr.mxu0 0.0
    %386 = vmatpush2.msra.mxu0 %v333
    %387 = vmatprep.subr.mxu0 0.0
    %388 = vmatpush2.msra.mxu0 %v332
    %389 = vmatprep.subr.mxu0 0.0
    %390 = vmatpush2.msra.mxu0 %v331
    %391 = vmatprep.subr.mxu0 0.0
    %392 = vmatpush2.msra.mxu0 %v330
    %393 = vmatprep.subr.mxu0 0.0
    %394 = vmatpush2.msra.mxu0 %v329
    %395 = vmatprep.subr.mxu0 0.0
    %396 = vmatpush2.msra.mxu0 %v328
    %397 = vmatprep.subr.mxu0 0.0
    %398 = vmatpush2.msra.mxu0 %v327
    %399 = vmatprep.subr.mxu0 0.0
    %400 = vmatpush2.msra.mxu0 %v326
    %401 = vmatprep.subr.mxu0 0.0
    %402 = vmatpush2.msra.mxu0 %v325
    %403 = vmatprep.subr.mxu0 0.0
    %404 = vmatpush2.msra.mxu0 %v324
    %405 = vmatprep.subr.mxu0 0.0
    %406 = vmatpush2.msra.mxu0 %v323
    %407 = vmatprep.subr.mxu0 0.0
    %408 = vmatpush2.msra.mxu0 %v322
    %409 = vmatprep.subr.mxu0 0.0
    %410 = vmatpush2.msra.mxu0 %v321
    %411 = vmatprep.subr.mxu0 0.0
    %412 = vmatpush2.msra.mxu0 %v320
    %413 = vmatprep.subr.mxu0 0.0
    %414 = vmatpush2.msra.mxu0 %v319
    %415 = vmatprep.mubr.f32.mxu0 %v160
    %416 = vmatmul.mubr.f32.gmra.mxu0 %v159
    %v417 = vpop.f32.mrf.mxu0
    %v418 = vadd.f32 0.0, %v417
    %v419 = vpop.f32.mrf.mxu0
    %420 = vmatprep.mubr.f32.mxu0 %v163
    %421 = vmatmul.mubr.f32.gmra.mxu0 %v162
    %v422 = vpop.f32.mrf.mxu0
    %v423 = vadd.f32 0.0, %v422
    %v424 = vpop.f32.mrf.mxu0
    %425 = vmatprep.mubr.f32.mxu0 %v166
    %426 = vmatmul.mubr.f32.gmra.mxu0 %v165
    %v427 = vpop.f32.mrf.mxu0
    %v428 = vadd.f32 0.0, %v427
    %v429 = vpop.f32.mrf.mxu0
    %430 = vmatprep.mubr.f32.mxu0 %v169
    %431 = vmatmul.mubr.f32.gmra.mxu0 %v168
    %v432 = vpop.f32.mrf.mxu0
    %v433 = vadd.f32 0.0, %v432
    %v434 = vpop.f32.mrf.mxu0
    %435 = vmatprep.mubr.f32.mxu0 %v172
    %436 = vmatmul.mubr.f32.gmra.mxu0 %v171
    %v437 = vpop.f32.mrf.mxu0
    %v438 = vadd.f32 0.0, %v437
    %v439 = vpop.f32.mrf.mxu0
    %440 = vmatprep.mubr.f32.mxu0 %v175
    %441 = vmatmul.mubr.f32.gmra.mxu0 %v174
    %v442 = vpop.f32.mrf.mxu0
    %v443 = vadd.f32 0.0, %v442
    %v444 = vpop.f32.mrf.mxu0
    %445 = vmatprep.mubr.f32.mxu0 %v178
    %446 = vmatmul.mubr.f32.gmra.mxu0 %v177
    %v447 = vpop.f32.mrf.mxu0
    %v448 = vadd.f32 0.0, %v447
    %v449 = vpop.f32.mrf.mxu0
    %450 = vmatprep.mubr.f32.mxu0 %v181
    %451 = vmatmul.mubr.f32.gmra.mxu0 %v180
    %v452 = vpop.f32.mrf.mxu0
    %v453 = vadd.f32 0.0, %v452
    %v454 = vpop.f32.mrf.mxu0
    %455 = vmatprep.mubr.f32.mxu0 %v184
    %456 = vmatmul.mubr.f32.gmra.mxu0 %v183
    %v457 = vpop.f32.mrf.mxu0
    %v458 = vadd.f32 0.0, %v457
    %v459 = vpop.f32.mrf.mxu0
    %460 = vmatprep.mubr.f32.mxu0 %v187
    %461 = vmatmul.mubr.f32.gmra.mxu0 %v186
    %v462 = vpop.f32.mrf.mxu0
    %v463 = vadd.f32 0.0, %v462
    %v464 = vpop.f32.mrf.mxu0
    %465 = vmatprep.mubr.f32.mxu0 %v190
    %466 = vmatmul.mubr.f32.gmra.mxu0 %v189
    %v467 = vpop.f32.mrf.mxu0
    %v468 = vadd.f32 0.0, %v467
    %v469 = vpop.f32.mrf.mxu0
    %470 = vmatprep.mubr.f32.mxu0 %v193
    %471 = vmatmul.mubr.f32.gmra.mxu0 %v192
    %v472 = vpop.f32.mrf.mxu0
    %v473 = vadd.f32 0.0, %v472
    %v474 = vpop.f32.mrf.mxu0
    %475 = vmatprep.mubr.f32.mxu0 %v196
    %476 = vmatmul.mubr.f32.gmra.mxu0 %v195
    %v477 = vpop.f32.mrf.mxu0
    %v478 = vadd.f32 0.0, %v477
    %v479 = vpop.f32.mrf.mxu0
    %480 = vmatprep.mubr.f32.mxu0 %v199
    %481 = vmatmul.mubr.f32.gmra.mxu0 %v198
    %v482 = vpop.f32.mrf.mxu0
    %v483 = vadd.f32 0.0, %v482
    %v484 = vpop.f32.mrf.mxu0
    %485 = vmatprep.mubr.f32.mxu0 %v202
    %486 = vmatmul.mubr.f32.gmra.mxu0 %v201
    %v487 = vpop.f32.mrf.mxu0
    %v488 = vadd.f32 0.0, %v487
    %v489 = vpop.f32.mrf.mxu0
    %490 = vmatprep.mubr.f32.mxu0 %v205
    %491 = vmatmul.mubr.f32.gmra.mxu0 %v204
    %v492 = vpop.f32.mrf.mxu0
    %v493 = vadd.f32 0.0, %v492
    %v494 = vpop.f32.mrf.mxu0
    %495 = vmatprep.mubr.f32.mxu0 %v208
    %496 = vmatmul.mubr.f32.gmra.mxu0 %v207
    %v497 = vpop.f32.mrf.mxu0
    %v498 = vadd.f32 0.0, %v497
    %v499 = vpop.f32.mrf.mxu0
    %500 = vmatprep.mubr.f32.mxu0 %v211
    %501 = vmatmul.mubr.f32.gmra.mxu0 %v210
    %v502 = vpop.f32.mrf.mxu0
    %v503 = vadd.f32 0.0, %v502
    %v504 = vpop.f32.mrf.mxu0
    %505 = vmatprep.mubr.f32.mxu0 %v214
    %506 = vmatmul.mubr.f32.gmra.mxu0 %v213
    %v507 = vpop.f32.mrf.mxu0
    %v508 = vadd.f32 0.0, %v507
    %v509 = vpop.f32.mrf.mxu0
    %510 = vmatprep.mubr.f32.mxu0 %v217
    %511 = vmatmul.mubr.f32.gmra.mxu0 %v216
    %v512 = vpop.f32.mrf.mxu0
    %v513 = vadd.f32 0.0, %v512
    %v514 = vpop.f32.mrf.mxu0
    %515 = vmatprep.mubr.f32.mxu0 %v220
    %516 = vmatmul.mubr.f32.gmra.mxu0 %v219
    %v517 = vpop.f32.mrf.mxu0
    %v518 = vadd.f32 0.0, %v517
    %v519 = vpop.f32.mrf.mxu0
    %520 = vmatprep.mubr.f32.mxu0 %v223
    %521 = vmatmul.mubr.f32.gmra.mxu0 %v222
    %v522 = vpop.f32.mrf.mxu0
    %v523 = vadd.f32 0.0, %v522
    %v524 = vpop.f32.mrf.mxu0
    %525 = vmatprep.mubr.f32.mxu0 %v226
    %526 = vmatmul.mubr.f32.gmra.mxu0 %v225
    %v527 = vpop.f32.mrf.mxu0
    %v528 = vadd.f32 0.0, %v527
    %v529 = vpop.f32.mrf.mxu0
    %530 = vmatprep.mubr.f32.mxu0 %v229
    %531 = vmatmul.mubr.f32.gmra.mxu0 %v228
    %v532 = vpop.f32.mrf.mxu0
    %v533 = vadd.f32 0.0, %v532
    %v534 = vpop.f32.mrf.mxu0
    %535 = vmatprep.mubr.f32.mxu0 %v232
    %536 = vmatmul.mubr.f32.gmra.mxu0 %v231
    %v537 = vpop.f32.mrf.mxu0
    %v538 = vadd.f32 0.0, %v537
    %v539 = vpop.f32.mrf.mxu0
    %540 = vmatprep.mubr.f32.mxu0 %v235
    %541 = vmatmul.mubr.f32.gmra.mxu0 %v234
    %v542 = vpop.f32.mrf.mxu0
    %v543 = vadd.f32 0.0, %v542
    %v544 = vpop.f32.mrf.mxu0
    %545 = vmatprep.mubr.f32.mxu0 %v238
    %546 = vmatmul.mubr.f32.gmra.mxu0 %v237
    %v547 = vpop.f32.mrf.mxu0
    %v548 = vadd.f32 0.0, %v547
    %v549 = vpop.f32.mrf.mxu0
    %550 = vmatprep.mubr.f32.mxu0 %v241
    %551 = vmatmul.mubr.f32.gmra.mxu0 %v240
    %v552 = vpop.f32.mrf.mxu0
    %v553 = vadd.f32 0.0, %v552
    %v554 = vpop.f32.mrf.mxu0
    %555 = vmatprep.mubr.f32.mxu0 %v244
    %556 = vmatmul.mubr.f32.gmra.mxu0 %v243
    %v557 = vpop.f32.mrf.mxu0
    %v558 = vadd.f32 0.0, %v557
    %v559 = vpop.f32.mrf.mxu0
    %560 = vmatprep.mubr.f32.mxu0 %v247
    %561 = vmatmul.mubr.f32.gmra.mxu0 %v246
    %v562 = vpop.f32.mrf.mxu0
    %v563 = vadd.f32 0.0, %v562
    %v564 = vpop.f32.mrf.mxu0
    %565 = vmatprep.mubr.f32.mxu0 %v250
    %566 = vmatmul.mubr.f32.gmra.mxu0 %v249
    %v567 = vpop.f32.mrf.mxu0
    %v568 = vadd.f32 0.0, %v567
    %v569 = vpop.f32.mrf.mxu0
    %570 = vmatprep.mubr.f32.mxu0 %v253
    %571 = vmatmul.mubr.f32.gmra.mxu0 %v252
    %v572 = vpop.f32.mrf.mxu0
    %v573 = vadd.f32 0.0, %v572
    %v574 = vpop.f32.mrf.mxu0
    %575 = vmatprep.mubr.f32.mxu0 %v256
    %576 = vmatmul.mubr.f32.gmra.mxu0 %v255
    %v577 = vpop.f32.mrf.mxu0
    %v578 = vadd.f32 0.0, %v577
    %v579 = vpop.f32.mrf.mxu0
    %580 = vmatprep.mubr.f32.mxu0 %v259
    %581 = vmatmul.mubr.f32.gmra.mxu0 %v258
    %v582 = vpop.f32.mrf.mxu0
    %v583 = vadd.f32 0.0, %v582
    %v584 = vpop.f32.mrf.mxu0
    %585 = vmatprep.mubr.f32.mxu0 %v262
    %586 = vmatmul.mubr.f32.gmra.mxu0 %v261
    %v587 = vpop.f32.mrf.mxu0
    %v588 = vadd.f32 0.0, %v587
    %v589 = vpop.f32.mrf.mxu0
    %590 = vmatprep.mubr.f32.mxu0 %v265
    %591 = vmatmul.mubr.f32.gmra.mxu0 %v264
    %v592 = vpop.f32.mrf.mxu0
    %v593 = vadd.f32 0.0, %v592
    %v594 = vpop.f32.mrf.mxu0
    %595 = vmatprep.mubr.f32.mxu0 %v268
    %596 = vmatmul.mubr.f32.gmra.mxu0 %v267
    %v597 = vpop.f32.mrf.mxu0
    %v598 = vadd.f32 0.0, %v597
    %v599 = vpop.f32.mrf.mxu0
    %600 = vmatprep.mubr.f32.mxu0 %v271
    %601 = vmatmul.mubr.f32.gmra.mxu0 %v270
    %v602 = vpop.f32.mrf.mxu0
    %v603 = vadd.f32 0.0, %v602
    %v604 = vpop.f32.mrf.mxu0
    %605 = vmatprep.mubr.f32.mxu0 %v274
    %606 = vmatmul.mubr.f32.gmra.mxu0 %v273
    %v607 = vpop.f32.mrf.mxu0
    %v608 = vadd.f32 0.0, %v607
    %v609 = vpop.f32.mrf.mxu0
    %610 = vmatprep.mubr.f32.mxu0 %v277
    %611 = vmatmul.mubr.f32.gmra.mxu0 %v276
    %v612 = vpop.f32.mrf.mxu0
    %v613 = vadd.f32 0.0, %v612
    %v614 = vpop.f32.mrf.mxu0
    %615 = vmatprep.mubr.f32.mxu0 %v280
    %616 = vmatmul.mubr.f32.gmra.mxu0 %v279
    %v617 = vpop.f32.mrf.mxu0
    %v618 = vadd.f32 0.0, %v617
    %v619 = vpop.f32.mrf.mxu0
    %620 = vmatprep.mubr.f32.mxu0 %v283
    %621 = vmatmul.mubr.f32.gmra.mxu0 %v282
    %v622 = vpop.f32.mrf.mxu0
    %v623 = vadd.f32 0.0, %v622
    %v624 = vpop.f32.mrf.mxu0
    %625 = vmatprep.mubr.f32.mxu0 %v286
    %626 = vmatmul.mubr.f32.gmra.mxu0 %v285
    %v627 = vpop.f32.mrf.mxu0
    %v628 = vadd.f32 0.0, %v627
    %v629 = vpop.f32.mrf.mxu0
    %630 = vmatprep.mubr.f32.mxu0 %v289
    %631 = vmatmul.mubr.f32.gmra.mxu0 %v288
    %v632 = vpop.f32.mrf.mxu0
    %v633 = vadd.f32 0.0, %v632
    %v634 = vpop.f32.mrf.mxu0
    %635 = vmatprep.mubr.f32.mxu0 %v292
    %636 = vmatmul.mubr.f32.gmra.mxu0 %v291
    %v637 = vpop.f32.mrf.mxu0
    %v638 = vadd.f32 0.0, %v637
    %v639 = vpop.f32.mrf.mxu0
    %640 = vmatprep.mubr.f32.mxu0 %v295
    %641 = vmatmul.mubr.f32.gmra.mxu0 %v294
    %v642 = vpop.f32.mrf.mxu0
    %v643 = vadd.f32 0.0, %v642
    %v644 = vpop.f32.mrf.mxu0
    %645 = vmatprep.mubr.f32.mxu0 %v298
    %646 = vmatmul.mubr.f32.gmra.mxu0 %v297
    %v647 = vpop.f32.mrf.mxu0
    %v648 = vadd.f32 0.0, %v647
    %v649 = vpop.f32.mrf.mxu0
    %650 = vmatprep.mubr.f32.mxu0 %v301
    %651 = vmatmul.mubr.f32.gmra.mxu0 %v300
    %v652 = vpop.f32.mrf.mxu0
    %v653 = vadd.f32 0.0, %v652
    %v654 = vpop.f32.mrf.mxu0
    %655 = vdwg.mxu0
    %656 = vmatprep.subr.mxu0 0.0
    %657 = vmatpush1.msra.mxu0 %v350
    %658 = vmatprep.subr.mxu0 0.0
    %659 = vmatpush1.msra.mxu0 %v349
    %660 = vmatprep.subr.mxu0 0.0
    %661 = vmatpush1.msra.mxu0 %v348
    %662 = vmatprep.subr.mxu0 0.0
    %663 = vmatpush1.msra.mxu0 %v347
    %664 = vmatprep.subr.mxu0 0.0
    %665 = vmatpush1.msra.mxu0 %v346
    %666 = vmatprep.subr.mxu0 0.0
    %667 = vmatpush1.msra.mxu0 %v345
    %668 = vmatprep.subr.mxu0 0.0
    %669 = vmatpush1.msra.mxu0 %v344
    %670 = vmatprep.subr.mxu0 0.0
    %671 = vmatpush1.msra.mxu0 %v343
    %672 = vmatprep.subr.mxu0 0.0
    %673 = vmatpush1.msra.mxu0 %v342
    %674 = vmatprep.subr.mxu0 0.0
    %675 = vmatpush1.msra.mxu0 %v341
    %676 = vmatprep.subr.mxu0 0.0
    %677 = vmatpush1.msra.mxu0 %v340
    %678 = vmatprep.subr.mxu0 0.0
    %679 = vmatpush1.msra.mxu0 %v339
    %680 = vmatprep.subr.mxu0 0.0
    %681 = vmatpush1.msra.mxu0 %v338
    %682 = vmatprep.subr.mxu0 0.0
    %683 = vmatpush1.msra.mxu0 %v337
    %684 = vmatprep.subr.mxu0 0.0
    %685 = vmatpush1.msra.mxu0 %v336
    %686 = vmatprep.subr.mxu0 0.0
    %687 = vmatpush1.msra.mxu0 %v335
    %688 = vmatprep.subr.mxu0 0.0
    %689 = vmatpush2.msra.mxu0 0.0
    %690 = vmatprep.subr.mxu0 0.0
    %691 = vmatpush2.msra.mxu0 0.0
    %692 = vmatprep.subr.mxu0 0.0
    %693 = vmatpush2.msra.mxu0 0.0
    %694 = vmatprep.subr.mxu0 0.0
    %695 = vmatpush2.msra.mxu0 0.0
    %696 = vmatprep.subr.mxu0 0.0
    %697 = vmatpush2.msra.mxu0 0.0
    %698 = vmatprep.subr.mxu0 0.0
    %699 = vmatpush2.msra.mxu0 0.0
    %700 = vmatprep.subr.mxu0 0.0
    %701 = vmatpush2.msra.mxu0 0.0
    %702 = vmatprep.subr.mxu0 0.0
    %703 = vmatpush2.msra.mxu0 0.0
    %704 = vmatprep.subr.mxu0 0.0
    %705 = vmatpush2.msra.mxu0 0.0
    %706 = vmatprep.subr.mxu0 0.0
    %707 = vmatpush2.msra.mxu0 0.0
    %708 = vmatprep.subr.mxu0 0.0
    %709 = vmatpush2.msra.mxu0 0.0
    %710 = vmatprep.subr.mxu0 0.0
    %711 = vmatpush2.msra.mxu0 0.0
    %712 = vmatprep.subr.mxu0 0.0
    %713 = vmatpush2.msra.mxu0 0.0
    %714 = vmatprep.subr.mxu0 0.0
    %715 = vmatpush2.msra.mxu0 0.0
    %716 = vmatprep.subr.mxu0 0.0
    %717 = vmatpush2.msra.mxu0 0.0
    %718 = vmatprep.subr.mxu0 0.0
    %719 = vmatpush2.msra.mxu0 0.0
    %720 = vmatprep.mubr.f32.mxu0 0.0
    %721 = vmatmul.mubr.f32.gmra.mxu0 %v161
    %v722 = vpop.f32.mrf.mxu0
    %v723 = vadd.f32 %v418, %v722
    %v724 = vpop.f32.mrf.mxu0
    %725 = vmatprep.mubr.f32.mxu0 0.0
    %726 = vmatmul.mubr.f32.gmra.mxu0 %v164
    %v727 = vpop.f32.mrf.mxu0
    %v728 = vadd.f32 %v423, %v727
    %v729 = vpop.f32.mrf.mxu0
    %730 = vmatprep.mubr.f32.mxu0 0.0
    %731 = vmatmul.mubr.f32.gmra.mxu0 %v167
    %v732 = vpop.f32.mrf.mxu0
    %v733 = vadd.f32 %v428, %v732
    %v734 = vpop.f32.mrf.mxu0
    %735 = vmatprep.mubr.f32.mxu0 0.0
    %736 = vmatmul.mubr.f32.gmra.mxu0 %v170
    %v737 = vpop.f32.mrf.mxu0
    %v738 = vadd.f32 %v433, %v737
    %v739 = vpop.f32.mrf.mxu0
    %740 = vmatprep.mubr.f32.mxu0 0.0
    %741 = vmatmul.mubr.f32.gmra.mxu0 %v173
    %v742 = vpop.f32.mrf.mxu0
    %v743 = vadd.f32 %v438, %v742
    %v744 = vpop.f32.mrf.mxu0
    %745 = vmatprep.mubr.f32.mxu0 0.0
    %746 = vmatmul.mubr.f32.gmra.mxu0 %v176
    %v747 = vpop.f32.mrf.mxu0
    %v748 = vadd.f32 %v443, %v747
    %v749 = vpop.f32.mrf.mxu0
    %750 = vmatprep.mubr.f32.mxu0 0.0
    %751 = vmatmul.mubr.f32.gmra.mxu0 %v179
    %v752 = vpop.f32.mrf.mxu0
    %v753 = vadd.f32 %v448, %v752
    %v754 = vpop.f32.mrf.mxu0
    %755 = vmatprep.mubr.f32.mxu0 0.0
    %756 = vmatmul.mubr.f32.gmra.mxu0 %v182
    %v757 = vpop.f32.mrf.mxu0
    %v758 = vadd.f32 %v453, %v757
    %v759 = vpop.f32.mrf.mxu0
    %760 = vmatprep.mubr.f32.mxu0 0.0
    %761 = vmatmul.mubr.f32.gmra.mxu0 %v185
    %v762 = vpop.f32.mrf.mxu0
    %v763 = vadd.f32 %v458, %v762
    %v764 = vpop.f32.mrf.mxu0
    %765 = vmatprep.mubr.f32.mxu0 0.0
    %766 = vmatmul.mubr.f32.gmra.mxu0 %v188
    %v767 = vpop.f32.mrf.mxu0
    %v768 = vadd.f32 %v463, %v767
    %v769 = vpop.f32.mrf.mxu0
    %770 = vmatprep.mubr.f32.mxu0 0.0
    %771 = vmatmul.mubr.f32.gmra.mxu0 %v191
    %v772 = vpop.f32.mrf.mxu0
    %v773 = vadd.f32 %v468, %v772
    %v774 = vpop.f32.mrf.mxu0
    %775 = vmatprep.mubr.f32.mxu0 0.0
    %776 = vmatmul.mubr.f32.gmra.mxu0 %v194
    %v777 = vpop.f32.mrf.mxu0
    %v778 = vadd.f32 %v473, %v777
    %v779 = vpop.f32.mrf.mxu0
    %780 = vmatprep.mubr.f32.mxu0 0.0
    %781 = vmatmul.mubr.f32.gmra.mxu0 %v197
    %v782 = vpop.f32.mrf.mxu0
    %v783 = vadd.f32 %v478, %v782
    %v784 = vpop.f32.mrf.mxu0
    %785 = vmatprep.mubr.f32.mxu0 0.0
    %786 = vmatmul.mubr.f32.gmra.mxu0 %v200
    %v787 = vpop.f32.mrf.mxu0
    %v788 = vadd.f32 %v483, %v787
    %v789 = vpop.f32.mrf.mxu0
    %790 = vmatprep.mubr.f32.mxu0 0.0
    %791 = vmatmul.mubr.f32.gmra.mxu0 %v203
    %v792 = vpop.f32.mrf.mxu0
    %v793 = vadd.f32 %v488, %v792
    %v794 = vpop.f32.mrf.mxu0
    %795 = vmatprep.mubr.f32.mxu0 0.0
    %796 = vmatmul.mubr.f32.gmra.mxu0 %v206
    %v797 = vpop.f32.mrf.mxu0
    %v798 = vadd.f32 %v493, %v797
    %v799 = vpop.f32.mrf.mxu0
    %800 = vmatprep.mubr.f32.mxu0 0.0
    %801 = vmatmul.mubr.f32.gmra.mxu0 %v209
    %v802 = vpop.f32.mrf.mxu0
    %v803 = vadd.f32 %v498, %v802
    %v804 = vpop.f32.mrf.mxu0
    %805 = vmatprep.mubr.f32.mxu0 0.0
    %806 = vmatmul.mubr.f32.gmra.mxu0 %v212
    %v807 = vpop.f32.mrf.mxu0
    %v808 = vadd.f32 %v503, %v807
    %v809 = vpop.f32.mrf.mxu0
    %810 = vmatprep.mubr.f32.mxu0 0.0
    %811 = vmatmul.mubr.f32.gmra.mxu0 %v215
    %v812 = vpop.f32.mrf.mxu0
    %v813 = vadd.f32 %v508, %v812
    %v814 = vpop.f32.mrf.mxu0
    %815 = vmatprep.mubr.f32.mxu0 0.0
    %816 = vmatmul.mubr.f32.gmra.mxu0 %v218
    %v817 = vpop.f32.mrf.mxu0
    %v818 = vadd.f32 %v513, %v817
    %v819 = vpop.f32.mrf.mxu0
    %820 = vmatprep.mubr.f32.mxu0 0.0
    %821 = vmatmul.mubr.f32.gmra.mxu0 %v221
    %v822 = vpop.f32.mrf.mxu0
    %v823 = vadd.f32 %v518, %v822
    %v824 = vpop.f32.mrf.mxu0
    %825 = vmatprep.mubr.f32.mxu0 0.0
    %826 = vmatmul.mubr.f32.gmra.mxu0 %v224
    %v827 = vpop.f32.mrf.mxu0
    %v828 = vadd.f32 %v523, %v827
    %v829 = vpop.f32.mrf.mxu0
    %830 = vmatprep.mubr.f32.mxu0 0.0
    %831 = vmatmul.mubr.f32.gmra.mxu0 %v227
    %v832 = vpop.f32.mrf.mxu0
    %v833 = vadd.f32 %v528, %v832
    %v834 = vpop.f32.mrf.mxu0
    %835 = vmatprep.mubr.f32.mxu0 0.0
    %836 = vmatmul.mubr.f32.gmra.mxu0 %v230
    %v837 = vpop.f32.mrf.mxu0
    %v838 = vadd.f32 %v533, %v837
    %v839 = vpop.f32.mrf.mxu0
    %840 = vmatprep.mubr.f32.mxu0 0.0
    %841 = vmatmul.mubr.f32.gmra.mxu0 %v233
    %v842 = vpop.f32.mrf.mxu0
    %v843 = vadd.f32 %v538, %v842
    %v844 = vpop.f32.mrf.mxu0
    %845 = vmatprep.mubr.f32.mxu0 0.0
    %846 = vmatmul.mubr.f32.gmra.mxu0 %v236
    %v847 = vpop.f32.mrf.mxu0
    %v848 = vadd.f32 %v543, %v847
    %v849 = vpop.f32.mrf.mxu0
    %850 = vmatprep.mubr.f32.mxu0 0.0
    %851 = vmatmul.mubr.f32.gmra.mxu0 %v239
    %v852 = vpop.f32.mrf.mxu0
    %v853 = vadd.f32 %v548, %v852
    %v854 = vpop.f32.mrf.mxu0
    %855 = vmatprep.mubr.f32.mxu0 0.0
    %856 = vmatmul.mubr.f32.gmra.mxu0 %v242
    %v857 = vpop.f32.mrf.mxu0
    %v858 = vadd.f32 %v553, %v857
    %v859 = vpop.f32.mrf.mxu0
    %860 = vmatprep.mubr.f32.mxu0 0.0
    %861 = vmatmul.mubr.f32.gmra.mxu0 %v245
    %v862 = vpop.f32.mrf.mxu0
    %v863 = vadd.f32 %v558, %v862
    %v864 = vpop.f32.mrf.mxu0
    %865 = vmatprep.mubr.f32.mxu0 0.0
    %866 = vmatmul.mubr.f32.gmra.mxu0 %v248
    %v867 = vpop.f32.mrf.mxu0
    %v868 = vadd.f32 %v563, %v867
    %v869 = vpop.f32.mrf.mxu0
    %870 = vmatprep.mubr.f32.mxu0 0.0
    %871 = vmatmul.mubr.f32.gmra.mxu0 %v251
    %v872 = vpop.f32.mrf.mxu0
    %v873 = vadd.f32 %v568, %v872
    %v874 = vpop.f32.mrf.mxu0
    %875 = vmatprep.mubr.f32.mxu0 0.0
    %876 = vmatmul.mubr.f32.gmra.mxu0 %v254
    %v877 = vpop.f32.mrf.mxu0
    %v878 = vadd.f32 %v573, %v877
    %v879 = vpop.f32.mrf.mxu0
    %880 = vmatprep.mubr.f32.mxu0 0.0
    %881 = vmatmul.mubr.f32.gmra.mxu0 %v257
    %v882 = vpop.f32.mrf.mxu0
    %v883 = vadd.f32 %v578, %v882
    %v884 = vpop.f32.mrf.mxu0
    %885 = vmatprep.mubr.f32.mxu0 0.0
    %886 = vmatmul.mubr.f32.gmra.mxu0 %v260
    %v887 = vpop.f32.mrf.mxu0
    %v888 = vadd.f32 %v583, %v887
    %v889 = vpop.f32.mrf.mxu0
    %890 = vmatprep.mubr.f32.mxu0 0.0
    %891 = vmatmul.mubr.f32.gmra.mxu0 %v263
    %v892 = vpop.f32.mrf.mxu0
    %v893 = vadd.f32 %v588, %v892
    %v894 = vpop.f32.mrf.mxu0
    %895 = vmatprep.mubr.f32.mxu0 0.0
    %896 = vmatmul.mubr.f32.gmra.mxu0 %v266
    %v897 = vpop.f32.mrf.mxu0
    %v898 = vadd.f32 %v593, %v897
    %v899 = vpop.f32.mrf.mxu0
    %900 = vmatprep.mubr.f32.mxu0 0.0
    %901 = vmatmul.mubr.f32.gmra.mxu0 %v269
    %v902 = vpop.f32.mrf.mxu0
    %v903 = vadd.f32 %v598, %v902
    %v904 = vpop.f32.mrf.mxu0
    %905 = vmatprep.mubr.f32.mxu0 0.0
    %906 = vmatmul.mubr.f32.gmra.mxu0 %v272
    %v907 = vpop.f32.mrf.mxu0
    %v908 = vadd.f32 %v603, %v907
    %v909 = vpop.f32.mrf.mxu0
    %910 = vmatprep.mubr.f32.mxu0 0.0
    %911 = vmatmul.mubr.f32.gmra.mxu0 %v275
    %v912 = vpop.f32.mrf.mxu0
    %v913 = vadd.f32 %v608, %v912
    %v914 = vpop.f32.mrf.mxu0
    %915 = vmatprep.mubr.f32.mxu0 0.0
    %916 = vmatmul.mubr.f32.gmra.mxu0 %v278
    %v917 = vpop.f32.mrf.mxu0
    %v918 = vadd.f32 %v613, %v917
    %v919 = vpop.f32.mrf.mxu0
    %920 = vmatprep.mubr.f32.mxu0 0.0
    %921 = vmatmul.mubr.f32.gmra.mxu0 %v281
    %v922 = vpop.f32.mrf.mxu0
    %v923 = vadd.f32 %v618, %v922
    %v924 = vpop.f32.mrf.mxu0
    %925 = vmatprep.mubr.f32.mxu0 0.0
    %926 = vmatmul.mubr.f32.gmra.mxu0 %v284
    %v927 = vpop.f32.mrf.mxu0
    %v928 = vadd.f32 %v623, %v927
    %v929 = vpop.f32.mrf.mxu0
    %930 = vmatprep.mubr.f32.mxu0 0.0
    %931 = vmatmul.mubr.f32.gmra.mxu0 %v287
    %v932 = vpop.f32.mrf.mxu0
    %v933 = vadd.f32 %v628, %v932
    %v934 = vpop.f32.mrf.mxu0
    %935 = vmatprep.mubr.f32.mxu0 0.0
    %936 = vmatmul.mubr.f32.gmra.mxu0 %v290
    %v937 = vpop.f32.mrf.mxu0
    %v938 = vadd.f32 %v633, %v937
    %v939 = vpop.f32.mrf.mxu0
    %940 = vmatprep.mubr.f32.mxu0 0.0
    %941 = vmatmul.mubr.f32.gmra.mxu0 %v293
    %v942 = vpop.f32.mrf.mxu0
    %v943 = vadd.f32 %v638, %v942
    %v944 = vpop.f32.mrf.mxu0
    %945 = vmatprep.mubr.f32.mxu0 0.0
    %946 = vmatmul.mubr.f32.gmra.mxu0 %v296
    %v947 = vpop.f32.mrf.mxu0
    %v948 = vadd.f32 %v643, %v947
    %v949 = vpop.f32.mrf.mxu0
    %950 = vmatprep.mubr.f32.mxu0 0.0
    %951 = vmatmul.mubr.f32.gmra.mxu0 %v299
    %v952 = vpop.f32.mrf.mxu0
    %v953 = vadd.f32 %v648, %v952
    %v954 = vpop.f32.mrf.mxu0
    %955 = vmatprep.mubr.f32.mxu0 0.0
    %956 = vmatmul.mubr.f32.gmra.mxu0 %v302
    %v957 = vpop.f32.mrf.mxu0
    %v958 = vadd.f32 %v653, %v957
    %v959 = vpop.f32.mrf.mxu0
    %960 = vdwg.mxu0
    %v961 = vadd.f32 %v111, %v723
    %v962 = vadd.f32 %v112, %v728
    %v963 = vadd.f32 %v113, %v733
    %v964 = vadd.f32 %v114, %v738
    %v965 = vadd.f32 %v115, %v743
    %v966 = vadd.f32 %v116, %v748
    %v967 = vadd.f32 %v117, %v753
    %v968 = vadd.f32 %v118, %v758
    %v969 = vadd.f32 %v119, %v763
    %v970 = vadd.f32 %v120, %v768
    %v971 = vadd.f32 %v121, %v773
    %v972 = vadd.f32 %v122, %v778
    %v973 = vadd.f32 %v123, %v783
    %v974 = vadd.f32 %v124, %v788
    %v975 = vadd.f32 %v125, %v793
    %v976 = vadd.f32 %v126, %v798
    %v977 = vadd.f32 %v127, %v803
    %v978 = vadd.f32 %v128, %v808
    %v979 = vadd.f32 %v129, %v813
    %v980 = vadd.f32 %v130, %v818
    %v981 = vadd.f32 %v131, %v823
    %v982 = vadd.f32 %v132, %v828
    %v983 = vadd.f32 %v133, %v833
    %v984 = vadd.f32 %v134, %v838
    %v985 = vadd.f32 %v135, %v843
    %v986 = vadd.f32 %v136, %v848
    %v987 = vadd.f32 %v137, %v853
    %v988 = vadd.f32 %v138, %v858
    %v989 = vadd.f32 %v139, %v863
    %v990 = vadd.f32 %v140, %v868
    %v991 = vadd.f32 %v141, %v873
    %v992 = vadd.f32 %v142, %v878
    %v993 = vadd.f32 %v143, %v883
    %v994 = vadd.f32 %v144, %v888
    %v995 = vadd.f32 %v145, %v893
    %v996 = vadd.f32 %v146, %v898
    %v997 = vadd.f32 %v147, %v903
    %v998 = vadd.f32 %v148, %v908
    %v999 = vadd.f32 %v149, %v913
    %v1000 = vadd.f32 %v150, %v918
    %v1001 = vadd.f32 %v151, %v923
    %v1002 = vadd.f32 %v152, %v928
    %v1003 = vadd.f32 %v153, %v933
    %v1004 = vadd.f32 %v154, %v938
    %v1005 = vadd.f32 %v155, %v943
    %v1006 = vadd.f32 %v156, %v948
    %v1007 = vadd.f32 %v157, %v953
    %v1008 = vadd.f32 %v158, %v958
    %1009 = vst [vmem:[#allocation2] sm:$0xff] %v961
    %1010 = vst [vmem:[#allocation2 + $0x8] sm:$0xff] %v962
    %1011 = vst [vmem:[#allocation2 + $0x10] sm:$0xff] %v963
    %1012 = vst [vmem:[#allocation2 + $0x18] sm:$0xff] %v964
    %1013 = vst [vmem:[#allocation2 + $0x20] sm:$0xff] %v965
    %1014 = vst [vmem:[#allocation2 + $0x28] sm:$0xff] %v966
    %1015 = vst [vmem:[#allocation2 + $0x30] sm:$0xff] %v967
    %1016 = vst [vmem:[#allocation2 + $0x38] sm:$0xff] %v968
    %1017 = vst [vmem:[#allocation2 + $0x40] sm:$0xff] %v969
    %1018 = vst [vmem:[#allocation2 + $0x48] sm:$0xff] %v970
    %1019 = vst [vmem:[#allocation2 + $0x50] sm:$0xff] %v971
    %1020 = vst [vmem:[#allocation2 + $0x58] sm:$0xff] %v972
    %1021 = vst [vmem:[#allocation2 + $0x60] sm:$0xff] %v973
    %1022 = vst [vmem:[#allocation2 + $0x68] sm:$0xff] %v974
    %1023 = vst [vmem:[#allocation2 + $0x70] sm:$0xff] %v975
    %1024 = vst [vmem:[#allocation2 + $0x78] sm:$0xff] %v976
    %1025 = vst [vmem:[#allocation2 + $0x80] sm:$0xff] %v977
    %1026 = vst [vmem:[#allocation2 + $0x88] sm:$0xff] %v978
    %1027 = vst [vmem:[#allocation2 + $0x90] sm:$0xff] %v979
    %1028 = vst [vmem:[#allocation2 + $0x98] sm:$0xff] %v980
    %1029 = vst [vmem:[#allocation2 + $0xa0] sm:$0xff] %v981
    %1030 = vst [vmem:[#allocation2 + $0xa8] sm:$0xff] %v982
    %1031 = vst [vmem:[#allocation2 + $0xb0] sm:$0xff] %v983
    %1032 = vst [vmem:[#allocation2 + $0xb8] sm:$0xff] %v984
    %1033 = vst [vmem:[#allocation2 + $0xc0] sm:$0xff] %v985
    %1034 = vst [vmem:[#allocation2 + $0xc8] sm:$0xff] %v986
    %1035 = vst [vmem:[#allocation2 + $0xd0] sm:$0xff] %v987
    %1036 = vst [vmem:[#allocation2 + $0xd8] sm:$0xff] %v988
    %1037 = vst [vmem:[#allocation2 + $0xe0] sm:$0xff] %v989
    %1038 = vst [vmem:[#allocation2 + $0xe8] sm:$0xff] %v990
    %1039 = vst [vmem:[#allocation2 + $0xf0] sm:$0xff] %v991
    %1040 = vst [vmem:[#allocation2 + $0xf8] sm:$0xff] %v992
    %1041 = vst [vmem:[#allocation2 + $0x100] sm:$0xff] %v993
    %1042 = vst [vmem:[#allocation2 + $0x108] sm:$0xff] %v994
    %1043 = vst [vmem:[#allocation2 + $0x110] sm:$0xff] %v995
    %1044 = vst [vmem:[#allocation2 + $0x118] sm:$0xff] %v996
    %1045 = vst [vmem:[#allocation2 + $0x120] sm:$0xff] %v997
    %1046 = vst [vmem:[#allocation2 + $0x128] sm:$0xff] %v998
    %1047 = vst [vmem:[#allocation2 + $0x130] sm:$0xff] %v999
    %1048 = vst [vmem:[#allocation2 + $0x138] sm:$0xff] %v1000
    %1049 = vst [vmem:[#allocation2 + $0x140] sm:$0xff] %v1001
    %1050 = vst [vmem:[#allocation2 + $0x148] sm:$0xff] %v1002
    %1051 = vst [vmem:[#allocation2 + $0x150] sm:$0xff] %v1003
    %1052 = vst [vmem:[#allocation2 + $0x158] sm:$0xff] %v1004
    %1053 = vst [vmem:[#allocation2 + $0x160] sm:$0xff] %v1005
    %1054 = vst [vmem:[#allocation2 + $0x168] sm:$0xff] %v1006
    %1055 = vst [vmem:[#allocation2 + $0x170] sm:$0xff] %v1007
    %1056 = vst [vmem:[#allocation2 + $0x178] sm:$0xff] %v1008
    // Predicated region
    $region34: #{tpu_custom_call.1} parent=1 // pred_check
      %p1057 = pneg %p59
    $region35: #{tpu_custom_call.1} parent=1 // pred_check_branch
      %1059 = sbr.rel (%p1057) target = $region37
    $region36: #{tpu_custom_call.1} parent=1 // pred_region
      %v1060 = vld [vmem:[#allocation2] sm:$0xff]
      %v1061 = vld [vmem:[#allocation2 + $0x8] sm:$0xff]
      %v1062 = vld [vmem:[#allocation2 + $0x10] sm:$0xff]
      %v1063 = vld [vmem:[#allocation2 + $0x18] sm:$0xff]
      %v1064 = vld [vmem:[#allocation2 + $0x20] sm:$0xff]
      %v1065 = vld [vmem:[#allocation2 + $0x28] sm:$0xff]
      %v1066 = vld [vmem:[#allocation2 + $0x30] sm:$0xff]
      %v1067 = vld [vmem:[#allocation2 + $0x38] sm:$0xff]
      %v1068 = vld [vmem:[#allocation2 + $0x40] sm:$0xff]
      %v1069 = vld [vmem:[#allocation2 + $0x48] sm:$0xff]
      %v1070 = vld [vmem:[#allocation2 + $0x50] sm:$0xff]
      %v1071 = vld [vmem:[#allocation2 + $0x58] sm:$0xff]
      %v1072 = vld [vmem:[#allocation2 + $0x60] sm:$0xff]
      %v1073 = vld [vmem:[#allocation2 + $0x68] sm:$0xff]
      %v1074 = vld [vmem:[#allocation2 + $0x70] sm:$0xff]
      %v1075 = vld [vmem:[#allocation2 + $0x78] sm:$0xff]
      %v1076 = vld [vmem:[#allocation2 + $0x80] sm:$0xff]
      %v1077 = vld [vmem:[#allocation2 + $0x88] sm:$0xff]
      %v1078 = vld [vmem:[#allocation2 + $0x90] sm:$0xff]
      %v1079 = vld [vmem:[#allocation2 + $0x98] sm:$0xff]
      %v1080 = vld [vmem:[#allocation2 + $0xa0] sm:$0xff]
      %v1081 = vld [vmem:[#allocation2 + $0xa8] sm:$0xff]
      %v1082 = vld [vmem:[#allocation2 + $0xb0] sm:$0xff]
      %v1083 = vld [vmem:[#allocation2 + $0xb8] sm:$0xff]
      %v1084 = vld [vmem:[#allocation2 + $0xc0] sm:$0xff]
      %v1085 = vld [vmem:[#allocation2 + $0xc8] sm:$0xff]
      %v1086 = vld [vmem:[#allocation2 + $0xd0] sm:$0xff]
      %v1087 = vld [vmem:[#allocation2 + $0xd8] sm:$0xff]
      %v1088 = vld [vmem:[#allocation2 + $0xe0] sm:$0xff]
      %v1089 = vld [vmem:[#allocation2 + $0xe8] sm:$0xff]
      %v1090 = vld [vmem:[#allocation2 + $0xf0] sm:$0xff]
      %v1091 = vld [vmem:[#allocation2 + $0xf8] sm:$0xff]
      %v1092 = vld [vmem:[#allocation2 + $0x100] sm:$0xff]
      %v1093 = vld [vmem:[#allocation2 + $0x108] sm:$0xff]
      %v1094 = vld [vmem:[#allocation2 + $0x110] sm:$0xff]
      %v1095 = vld [vmem:[#allocation2 + $0x118] sm:$0xff]
      %v1096 = vld [vmem:[#allocation2 + $0x120] sm:$0xff]
      %v1097 = vld [vmem:[#allocation2 + $0x128] sm:$0xff]
      %v1098 = vld [vmem:[#allocation2 + $0x130] sm:$0xff]
      %v1099 = vld [vmem:[#allocation2 + $0x138] sm:$0xff]
      %v1100 = vld [vmem:[#allocation2 + $0x140] sm:$0xff]
      %v1101 = vld [vmem:[#allocation2 + $0x148] sm:$0xff]
      %v1102 = vld [vmem:[#allocation2 + $0x150] sm:$0xff]
      %v1103 = vld [vmem:[#allocation2 + $0x158] sm:$0xff]
      %v1104 = vld [vmem:[#allocation2 + $0x160] sm:$0xff]
      %v1105 = vld [vmem:[#allocation2 + $0x168] sm:$0xff]
      %v1106 = vld [vmem:[#allocation2 + $0x170] sm:$0xff]
      %v1107 = vld [vmem:[#allocation2 + $0x178] sm:$0xff]
      %v1108 = vld [vmem:[#allocation8] sm:$0xff]
      %v1109 = vld [vmem:[#allocation8 + $0x8] sm:$0xff]
      %v1110 = vld [vmem:[#allocation8 + $0x10] sm:$0xff]
      %v1111 = vld [vmem:[#allocation8 + $0x18] sm:$0xff]
      %v1112 = vld [vmem:[#allocation8 + $0x20] sm:$0xff]
      %v1113 = vld [vmem:[#allocation8 + $0x28] sm:$0xff]
      %v1114 = vld [vmem:[#allocation8 + $0x30] sm:$0xff]
      %v1115 = vld [vmem:[#allocation8 + $0x38] sm:$0xff]
      %v1116 = vld [vmem:[#allocation8 + $0x40] sm:$0xff]
      %v1117 = vld [vmem:[#allocation8 + $0x48] sm:$0xff]
      %v1118 = vld [vmem:[#allocation8 + $0x50] sm:$0xff]
      %v1119 = vld [vmem:[#allocation8 + $0x58] sm:$0xff]
      %v1120 = vld [vmem:[#allocation8 + $0x60] sm:$0xff]
      %v1121 = vld [vmem:[#allocation8 + $0x68] sm:$0xff]
      %v1122 = vld [vmem:[#allocation8 + $0x70] sm:$0xff]
      %v1123 = vld [vmem:[#allocation8 + $0x78] sm:$0xff]
      %v1124 = vld [vmem:[#allocation8 + $0x80] sm:$0xff]
      %v1125 = vld [vmem:[#allocation8 + $0x88] sm:$0xff]
      %v1126 = vld [vmem:[#allocation8 + $0x90] sm:$0xff]
      %v1127 = vld [vmem:[#allocation8 + $0x98] sm:$0xff]
      %v1128 = vld [vmem:[#allocation8 + $0xa0] sm:$0xff]
      %v1129 = vld [vmem:[#allocation8 + $0xa8] sm:$0xff]
      %v1130 = vld [vmem:[#allocation8 + $0xb0] sm:$0xff]
      %v1131 = vld [vmem:[#allocation8 + $0xb8] sm:$0xff]
      %v1132 = vld [vmem:[#allocation8 + $0xc0] sm:$0xff]
      %v1133 = vld [vmem:[#allocation8 + $0xc8] sm:$0xff]
      %v1134 = vld [vmem:[#allocation8 + $0xd0] sm:$0xff]
      %v1135 = vld [vmem:[#allocation8 + $0xd8] sm:$0xff]
      %v1136 = vld [vmem:[#allocation8 + $0xe0] sm:$0xff]
      %v1137 = vld [vmem:[#allocation8 + $0xe8] sm:$0xff]
      %v1138 = vld [vmem:[#allocation8 + $0xf0] sm:$0xff]
      %v1139 = vld [vmem:[#allocation8 + $0xf8] sm:$0xff]
      %v1140 = vld [vmem:[%s3] sm:$0x3]
      %v1142 = vlaneseq
      %v1143 = vshrl.u32 %v1142, 7
      %v1144 = vsub.s32 0, %v1143
      %v1145 = vrot.slane %v1140, %v1144
      %v1146 = vlaneseq
      %v1147 = vshrl.u32 %v1146, 7
      %v1148 = vsub.s32 1, %v1147
      %v1149 = vrot.slane %v1140, %v1148
      %1152 = vmatprep.subr.mxu0 %v1139
      %1153 = vmatpush1.msra.mxu0 %v1138
      %1154 = vmatprep.subr.mxu0 %v1137
      %1155 = vmatpush1.msra.mxu0 %v1136
      %1156 = vmatprep.subr.mxu0 %v1135
      %1157 = vmatpush1.msra.mxu0 %v1134
      %1158 = vmatprep.subr.mxu0 %v1133
      %1159 = vmatpush1.msra.mxu0 %v1132
      %1160 = vmatprep.subr.mxu0 %v1131
      %1161 = vmatpush1.msra.mxu0 %v1130
      %1162 = vmatprep.subr.mxu0 %v1129
      %1163 = vmatpush1.msra.mxu0 %v1128
      %1164 = vmatprep.subr.mxu0 %v1127
      %1165 = vmatpush1.msra.mxu0 %v1126
      %1166 = vmatprep.subr.mxu0 %v1125
      %1167 = vmatpush1.msra.mxu0 %v1124
      %1168 = vmatprep.subr.mxu0 %v1123
      %1169 = vmatpush1.msra.mxu0 %v1122
      %1170 = vmatprep.subr.mxu0 %v1121
      %1171 = vmatpush1.msra.mxu0 %v1120
      %1172 = vmatprep.subr.mxu0 %v1119
      %1173 = vmatpush1.msra.mxu0 %v1118
      %1174 = vmatprep.subr.mxu0 %v1117
      %1175 = vmatpush1.msra.mxu0 %v1116
      %1176 = vmatprep.subr.mxu0 %v1115
      %1177 = vmatpush1.msra.mxu0 %v1114
      %1178 = vmatprep.subr.mxu0 %v1113
      %1179 = vmatpush1.msra.mxu0 %v1112
      %1180 = vmatprep.subr.mxu0 %v1111
      %1181 = vmatpush1.msra.mxu0 %v1110
      %1182 = vmatprep.subr.mxu0 %v1109
      %1183 = vmatpush1.msra.mxu0 %v1108
      %1184 = vmatprep.subr.mxu0 0.0
      %1185 = vmatpush2.msra.mxu0 0.0
      %1186 = vmatprep.subr.mxu0 0.0
      %1187 = vmatpush2.msra.mxu0 0.0
      %1188 = vmatprep.subr.mxu0 0.0
      %1189 = vmatpush2.msra.mxu0 0.0
      %1190 = vmatprep.subr.mxu0 0.0
      %1191 = vmatpush2.msra.mxu0 0.0
      %1192 = vmatprep.subr.mxu0 0.0
      %1193 = vmatpush2.msra.mxu0 0.0
      %1194 = vmatprep.subr.mxu0 0.0
      %1195 = vmatpush2.msra.mxu0 0.0
      %1196 = vmatprep.subr.mxu0 0.0
      %1197 = vmatpush2.msra.mxu0 0.0
      %1198 = vmatprep.subr.mxu0 0.0
      %1199 = vmatpush2.msra.mxu0 0.0
      %1200 = vmatprep.subr.mxu0 0.0
      %1201 = vmatpush2.msra.mxu0 0.0
      %1202 = vmatprep.subr.mxu0 0.0
      %1203 = vmatpush2.msra.mxu0 0.0
      %1204 = vmatprep.subr.mxu0 0.0
      %1205 = vmatpush2.msra.mxu0 0.0
      %1206 = vmatprep.subr.mxu0 0.0
      %1207 = vmatpush2.msra.mxu0 0.0
      %1208 = vmatprep.subr.mxu0 0.0
      %1209 = vmatpush2.msra.mxu0 0.0
      %1210 = vmatprep.subr.mxu0 0.0
      %1211 = vmatpush2.msra.mxu0 0.0
      %1212 = vmatprep.subr.mxu0 0.0
      %1213 = vmatpush2.msra.mxu0 0.0
      %1214 = vmatprep.subr.mxu0 0.0
      %1215 = vmatpush2.msra.mxu0 0.0
      %1216 = vmatprep.mubr.f32.mxu0 0.0
      %1217 = vmatmul.mubr.f32.gmra.mxu0 %v1060
      %v1218 = vpop.f32.mrf.mxu0
      %v1219 = vadd.f32 %v1145, %v1218
      %v1220 = vpop.f32.mrf.mxu0
      %v1221 = vadd.f32 %v1149, %v1220
      %1222 = vmatprep.mubr.f32.mxu0 0.0
      %1223 = vmatmul.mubr.f32.gmra.mxu0 %v1061
      %v1224 = vpop.f32.mrf.mxu0
      %v1225 = vadd.f32 %v1145, %v1224
      %v1226 = vpop.f32.mrf.mxu0
      %v1227 = vadd.f32 %v1149, %v1226
      %1228 = vmatprep.mubr.f32.mxu0 0.0
      %1229 = vmatmul.mubr.f32.gmra.mxu0 %v1062
      %v1230 = vpop.f32.mrf.mxu0
      %v1231 = vadd.f32 %v1145, %v1230
      %v1232 = vpop.f32.mrf.mxu0
      %v1233 = vadd.f32 %v1149, %v1232
      %1234 = vmatprep.mubr.f32.mxu0 0.0
      %1235 = vmatmul.mubr.f32.gmra.mxu0 %v1063
      %v1236 = vpop.f32.mrf.mxu0
      %v1237 = vadd.f32 %v1145, %v1236
      %v1238 = vpop.f32.mrf.mxu0
      %v1239 = vadd.f32 %v1149, %v1238
      %1240 = vmatprep.mubr.f32.mxu0 0.0
      %1241 = vmatmul.mubr.f32.gmra.mxu0 %v1064
      %v1242 = vpop.f32.mrf.mxu0
      %v1243 = vadd.f32 %v1145, %v1242
      %v1244 = vpop.f32.mrf.mxu0
      %v1245 = vadd.f32 %v1149, %v1244
      %1246 = vmatprep.mubr.f32.mxu0 0.0
      %1247 = vmatmul.mubr.f32.gmra.mxu0 %v1065
      %v1248 = vpop.f32.mrf.mxu0
      %v1249 = vadd.f32 %v1145, %v1248
      %v1250 = vpop.f32.mrf.mxu0
      %v1251 = vadd.f32 %v1149, %v1250
      %1252 = vmatprep.mubr.f32.mxu0 0.0
      %1253 = vmatmul.mubr.f32.gmra.mxu0 %v1066
      %v1254 = vpop.f32.mrf.mxu0
      %v1255 = vadd.f32 %v1145, %v1254
      %v1256 = vpop.f32.mrf.mxu0
      %v1257 = vadd.f32 %v1149, %v1256
      %1258 = vmatprep.mubr.f32.mxu0 0.0
      %1259 = vmatmul.mubr.f32.gmra.mxu0 %v1067
      %v1260 = vpop.f32.mrf.mxu0
      %v1261 = vadd.f32 %v1145, %v1260
      %v1262 = vpop.f32.mrf.mxu0
      %v1263 = vadd.f32 %v1149, %v1262
      %1264 = vmatprep.mubr.f32.mxu0 0.0
      %1265 = vmatmul.mubr.f32.gmra.mxu0 %v1068
      %v1266 = vpop.f32.mrf.mxu0
      %v1267 = vadd.f32 %v1145, %v1266
      %v1268 = vpop.f32.mrf.mxu0
      %v1269 = vadd.f32 %v1149, %v1268
      %1270 = vmatprep.mubr.f32.mxu0 0.0
      %1271 = vmatmul.mubr.f32.gmra.mxu0 %v1069
      %v1272 = vpop.f32.mrf.mxu0
      %v1273 = vadd.f32 %v1145, %v1272
      %v1274 = vpop.f32.mrf.mxu0
      %v1275 = vadd.f32 %v1149, %v1274
      %1276 = vmatprep.mubr.f32.mxu0 0.0
      %1277 = vmatmul.mubr.f32.gmra.mxu0 %v1070
      %v1278 = vpop.f32.mrf.mxu0
      %v1279 = vadd.f32 %v1145, %v1278
      %v1280 = vpop.f32.mrf.mxu0
      %v1281 = vadd.f32 %v1149, %v1280
      %1282 = vmatprep.mubr.f32.mxu0 0.0
      %1283 = vmatmul.mubr.f32.gmra.mxu0 %v1071
      %v1284 = vpop.f32.mrf.mxu0
      %v1285 = vadd.f32 %v1145, %v1284
      %v1286 = vpop.f32.mrf.mxu0
      %v1287 = vadd.f32 %v1149, %v1286
      %1288 = vmatprep.mubr.f32.mxu0 0.0
      %1289 = vmatmul.mubr.f32.gmra.mxu0 %v1072
      %v1290 = vpop.f32.mrf.mxu0
      %v1291 = vadd.f32 %v1145, %v1290
      %v1292 = vpop.f32.mrf.mxu0
      %v1293 = vadd.f32 %v1149, %v1292
      %1294 = vmatprep.mubr.f32.mxu0 0.0
      %1295 = vmatmul.mubr.f32.gmra.mxu0 %v1073
      %v1296 = vpop.f32.mrf.mxu0
      %v1297 = vadd.f32 %v1145, %v1296
      %v1298 = vpop.f32.mrf.mxu0
      %v1299 = vadd.f32 %v1149, %v1298
      %1300 = vmatprep.mubr.f32.mxu0 0.0
      %1301 = vmatmul.mubr.f32.gmra.mxu0 %v1074
      %v1302 = vpop.f32.mrf.mxu0
      %v1303 = vadd.f32 %v1145, %v1302
      %v1304 = vpop.f32.mrf.mxu0
      %v1305 = vadd.f32 %v1149, %v1304
      %1306 = vmatprep.mubr.f32.mxu0 0.0
      %1307 = vmatmul.mubr.f32.gmra.mxu0 %v1075
      %v1308 = vpop.f32.mrf.mxu0
      %v1309 = vadd.f32 %v1145, %v1308
      %v1310 = vpop.f32.mrf.mxu0
      %v1311 = vadd.f32 %v1149, %v1310
      %1312 = vmatprep.mubr.f32.mxu0 0.0
      %1313 = vmatmul.mubr.f32.gmra.mxu0 %v1076
      %v1314 = vpop.f32.mrf.mxu0
      %v1315 = vadd.f32 %v1145, %v1314
      %v1316 = vpop.f32.mrf.mxu0
      %v1317 = vadd.f32 %v1149, %v1316
      %1318 = vmatprep.mubr.f32.mxu0 0.0
      %1319 = vmatmul.mubr.f32.gmra.mxu0 %v1077
      %v1320 = vpop.f32.mrf.mxu0
      %v1321 = vadd.f32 %v1145, %v1320
      %v1322 = vpop.f32.mrf.mxu0
      %v1323 = vadd.f32 %v1149, %v1322
      %1324 = vmatprep.mubr.f32.mxu0 0.0
      %1325 = vmatmul.mubr.f32.gmra.mxu0 %v1078
      %v1326 = vpop.f32.mrf.mxu0
      %v1327 = vadd.f32 %v1145, %v1326
      %v1328 = vpop.f32.mrf.mxu0
      %v1329 = vadd.f32 %v1149, %v1328
      %1330 = vmatprep.mubr.f32.mxu0 0.0
      %1331 = vmatmul.mubr.f32.gmra.mxu0 %v1079
      %v1332 = vpop.f32.mrf.mxu0
      %v1333 = vadd.f32 %v1145, %v1332
      %v1334 = vpop.f32.mrf.mxu0
      %v1335 = vadd.f32 %v1149, %v1334
      %1336 = vmatprep.mubr.f32.mxu0 0.0
      %1337 = vmatmul.mubr.f32.gmra.mxu0 %v1080
      %v1338 = vpop.f32.mrf.mxu0
      %v1339 = vadd.f32 %v1145, %v1338
      %v1340 = vpop.f32.mrf.mxu0
      %v1341 = vadd.f32 %v1149, %v1340
      %1342 = vmatprep.mubr.f32.mxu0 0.0
      %1343 = vmatmul.mubr.f32.gmra.mxu0 %v1081
      %v1344 = vpop.f32.mrf.mxu0
      %v1345 = vadd.f32 %v1145, %v1344
      %v1346 = vpop.f32.mrf.mxu0
      %v1347 = vadd.f32 %v1149, %v1346
      %1348 = vmatprep.mubr.f32.mxu0 0.0
      %1349 = vmatmul.mubr.f32.gmra.mxu0 %v1082
      %v1350 = vpop.f32.mrf.mxu0
      %v1351 = vadd.f32 %v1145, %v1350
      %v1352 = vpop.f32.mrf.mxu0
      %v1353 = vadd.f32 %v1149, %v1352
      %1354 = vmatprep.mubr.f32.mxu0 0.0
      %1355 = vmatmul.mubr.f32.gmra.mxu0 %v1083
      %v1356 = vpop.f32.mrf.mxu0
      %v1357 = vadd.f32 %v1145, %v1356
      %v1358 = vpop.f32.mrf.mxu0
      %v1359 = vadd.f32 %v1149, %v1358
      %1360 = vmatprep.mubr.f32.mxu0 0.0
      %1361 = vmatmul.mubr.f32.gmra.mxu0 %v1084
      %v1362 = vpop.f32.mrf.mxu0
      %v1363 = vadd.f32 %v1145, %v1362
      %v1364 = vpop.f32.mrf.mxu0
      %v1365 = vadd.f32 %v1149, %v1364
      %1366 = vmatprep.mubr.f32.mxu0 0.0
      %1367 = vmatmul.mubr.f32.gmra.mxu0 %v1085
      %v1368 = vpop.f32.mrf.mxu0
      %v1369 = vadd.f32 %v1145, %v1368
      %v1370 = vpop.f32.mrf.mxu0
      %v1371 = vadd.f32 %v1149, %v1370
      %1372 = vmatprep.mubr.f32.mxu0 0.0
      %1373 = vmatmul.mubr.f32.gmra.mxu0 %v1086
      %v1374 = vpop.f32.mrf.mxu0
      %v1375 = vadd.f32 %v1145, %v1374
      %v1376 = vpop.f32.mrf.mxu0
      %v1377 = vadd.f32 %v1149, %v1376
      %1378 = vmatprep.mubr.f32.mxu0 0.0
      %1379 = vmatmul.mubr.f32.gmra.mxu0 %v1087
      %v1380 = vpop.f32.mrf.mxu0
      %v1381 = vadd.f32 %v1145, %v1380
      %v1382 = vpop.f32.mrf.mxu0
      %v1383 = vadd.f32 %v1149, %v1382
      %1384 = vmatprep.mubr.f32.mxu0 0.0
      %1385 = vmatmul.mubr.f32.gmra.mxu0 %v1088
      %v1386 = vpop.f32.mrf.mxu0
      %v1387 = vadd.f32 %v1145, %v1386
      %v1388 = vpop.f32.mrf.mxu0
      %v1389 = vadd.f32 %v1149, %v1388
      %1390 = vmatprep.mubr.f32.mxu0 0.0
      %1391 = vmatmul.mubr.f32.gmra.mxu0 %v1089
      %v1392 = vpop.f32.mrf.mxu0
      %v1393 = vadd.f32 %v1145, %v1392
      %v1394 = vpop.f32.mrf.mxu0
      %v1395 = vadd.f32 %v1149, %v1394
      %1396 = vmatprep.mubr.f32.mxu0 0.0
      %1397 = vmatmul.mubr.f32.gmra.mxu0 %v1090
      %v1398 = vpop.f32.mrf.mxu0
      %v1399 = vadd.f32 %v1145, %v1398
      %v1400 = vpop.f32.mrf.mxu0
      %v1401 = vadd.f32 %v1149, %v1400
      %1402 = vmatprep.mubr.f32.mxu0 0.0
      %1403 = vmatmul.mubr.f32.gmra.mxu0 %v1091
      %v1404 = vpop.f32.mrf.mxu0
      %v1405 = vadd.f32 %v1145, %v1404
      %v1406 = vpop.f32.mrf.mxu0
      %v1407 = vadd.f32 %v1149, %v1406
      %1408 = vmatprep.mubr.f32.mxu0 0.0
      %1409 = vmatmul.mubr.f32.gmra.mxu0 %v1092
      %v1410 = vpop.f32.mrf.mxu0
      %v1411 = vadd.f32 %v1145, %v1410
      %v1412 = vpop.f32.mrf.mxu0
      %v1413 = vadd.f32 %v1149, %v1412
      %1414 = vmatprep.mubr.f32.mxu0 0.0
      %1415 = vmatmul.mubr.f32.gmra.mxu0 %v1093
      %v1416 = vpop.f32.mrf.mxu0
      %v1417 = vadd.f32 %v1145, %v1416
      %v1418 = vpop.f32.mrf.mxu0
      %v1419 = vadd.f32 %v1149, %v1418
      %1420 = vmatprep.mubr.f32.mxu0 0.0
      %1421 = vmatmul.mubr.f32.gmra.mxu0 %v1094
      %v1422 = vpop.f32.mrf.mxu0
      %v1423 = vadd.f32 %v1145, %v1422
      %v1424 = vpop.f32.mrf.mxu0
      %v1425 = vadd.f32 %v1149, %v1424
      %1426 = vmatprep.mubr.f32.mxu0 0.0
      %1427 = vmatmul.mubr.f32.gmra.mxu0 %v1095
      %v1428 = vpop.f32.mrf.mxu0
      %v1429 = vadd.f32 %v1145, %v1428
      %v1430 = vpop.f32.mrf.mxu0
      %v1431 = vadd.f32 %v1149, %v1430
      %1432 = vmatprep.mubr.f32.mxu0 0.0
      %1433 = vmatmul.mubr.f32.gmra.mxu0 %v1096
      %v1434 = vpop.f32.mrf.mxu0
      %v1435 = vadd.f32 %v1145, %v1434
      %v1436 = vpop.f32.mrf.mxu0
      %v1437 = vadd.f32 %v1149, %v1436
      %1438 = vmatprep.mubr.f32.mxu0 0.0
      %1439 = vmatmul.mubr.f32.gmra.mxu0 %v1097
      %v1440 = vpop.f32.mrf.mxu0
      %v1441 = vadd.f32 %v1145, %v1440
      %v1442 = vpop.f32.mrf.mxu0
      %v1443 = vadd.f32 %v1149, %v1442
      %1444 = vmatprep.mubr.f32.mxu0 0.0
      %1445 = vmatmul.mubr.f32.gmra.mxu0 %v1098
      %v1446 = vpop.f32.mrf.mxu0
      %v1447 = vadd.f32 %v1145, %v1446
      %v1448 = vpop.f32.mrf.mxu0
      %v1449 = vadd.f32 %v1149, %v1448
      %1450 = vmatprep.mubr.f32.mxu0 0.0
      %1451 = vmatmul.mubr.f32.gmra.mxu0 %v1099
      %v1452 = vpop.f32.mrf.mxu0
      %v1453 = vadd.f32 %v1145, %v1452
      %v1454 = vpop.f32.mrf.mxu0
      %v1455 = vadd.f32 %v1149, %v1454
      %1456 = vmatprep.mubr.f32.mxu0 0.0
      %1457 = vmatmul.mubr.f32.gmra.mxu0 %v1100
      %v1458 = vpop.f32.mrf.mxu0
      %v1459 = vadd.f32 %v1145, %v1458
      %v1460 = vpop.f32.mrf.mxu0
      %v1461 = vadd.f32 %v1149, %v1460
      %1462 = vmatprep.mubr.f32.mxu0 0.0
      %1463 = vmatmul.mubr.f32.gmra.mxu0 %v1101
      %v1464 = vpop.f32.mrf.mxu0
      %v1465 = vadd.f32 %v1145, %v1464
      %v1466 = vpop.f32.mrf.mxu0
      %v1467 = vadd.f32 %v1149, %v1466
      %1468 = vmatprep.mubr.f32.mxu0 0.0
      %1469 = vmatmul.mubr.f32.gmra.mxu0 %v1102
      %v1470 = vpop.f32.mrf.mxu0
      %v1471 = vadd.f32 %v1145, %v1470
      %v1472 = vpop.f32.mrf.mxu0
      %v1473 = vadd.f32 %v1149, %v1472
      %1474 = vmatprep.mubr.f32.mxu0 0.0
      %1475 = vmatmul.mubr.f32.gmra.mxu0 %v1103
      %v1476 = vpop.f32.mrf.mxu0
      %v1477 = vadd.f32 %v1145, %v1476
      %v1478 = vpop.f32.mrf.mxu0
      %v1479 = vadd.f32 %v1149, %v1478
      %1480 = vmatprep.mubr.f32.mxu0 0.0
      %1481 = vmatmul.mubr.f32.gmra.mxu0 %v1104
      %v1482 = vpop.f32.mrf.mxu0
      %v1483 = vadd.f32 %v1145, %v1482
      %v1484 = vpop.f32.mrf.mxu0
      %v1485 = vadd.f32 %v1149, %v1484
      %1486 = vmatprep.mubr.f32.mxu0 0.0
      %1487 = vmatmul.mubr.f32.gmra.mxu0 %v1105
      %v1488 = vpop.f32.mrf.mxu0
      %v1489 = vadd.f32 %v1145, %v1488
      %v1490 = vpop.f32.mrf.mxu0
      %v1491 = vadd.f32 %v1149, %v1490
      %1492 = vmatprep.mubr.f32.mxu0 0.0
      %1493 = vmatmul.mubr.f32.gmra.mxu0 %v1106
      %v1494 = vpop.f32.mrf.mxu0
      %v1495 = vadd.f32 %v1145, %v1494
      %v1496 = vpop.f32.mrf.mxu0
      %v1497 = vadd.f32 %v1149, %v1496
      %1498 = vmatprep.mubr.f32.mxu0 0.0
      %1499 = vmatmul.mubr.f32.gmra.mxu0 %v1107
      %v1500 = vpop.f32.mrf.mxu0
      %v1501 = vadd.f32 %v1145, %v1500
      %v1502 = vpop.f32.mrf.mxu0
      %v1503 = vadd.f32 %v1149, %v1502
      %1504 = vdwg.mxu0
      %v1505 = vmax.f32 %v1219, 0.0
      %v1506 = vmax.f32 %v1221, 0.0
      %v1507 = vmax.f32 %v1225, 0.0
      %v1508 = vmax.f32 %v1227, 0.0
      %v1509 = vmax.f32 %v1231, 0.0
      %v1510 = vmax.f32 %v1233, 0.0
      %v1511 = vmax.f32 %v1237, 0.0
      %v1512 = vmax.f32 %v1239, 0.0
      %v1513 = vmax.f32 %v1243, 0.0
      %v1514 = vmax.f32 %v1245, 0.0
      %v1515 = vmax.f32 %v1249, 0.0
      %v1516 = vmax.f32 %v1251, 0.0
      %v1517 = vmax.f32 %v1255, 0.0
      %v1518 = vmax.f32 %v1257, 0.0
      %v1519 = vmax.f32 %v1261, 0.0
      %v1520 = vmax.f32 %v1263, 0.0
      %v1521 = vmax.f32 %v1267, 0.0
      %v1522 = vmax.f32 %v1269, 0.0
      %v1523 = vmax.f32 %v1273, 0.0
      %v1524 = vmax.f32 %v1275, 0.0
      %v1525 = vmax.f32 %v1279, 0.0
      %v1526 = vmax.f32 %v1281, 0.0
      %v1527 = vmax.f32 %v1285, 0.0
      %v1528 = vmax.f32 %v1287, 0.0
      %v1529 = vmax.f32 %v1291, 0.0
      %v1530 = vmax.f32 %v1293, 0.0
      %v1531 = vmax.f32 %v1297, 0.0
      %v1532 = vmax.f32 %v1299, 0.0
      %v1533 = vmax.f32 %v1303, 0.0
      %v1534 = vmax.f32 %v1305, 0.0
      %v1535 = vmax.f32 %v1309, 0.0
      %v1536 = vmax.f32 %v1311, 0.0
      %v1537 = vmax.f32 %v1315, 0.0
      %v1538 = vmax.f32 %v1317, 0.0
      %v1539 = vmax.f32 %v1321, 0.0
      %v1540 = vmax.f32 %v1323, 0.0
      %v1541 = vmax.f32 %v1327, 0.0
      %v1542 = vmax.f32 %v1329, 0.0
      %v1543 = vmax.f32 %v1333, 0.0
      %v1544 = vmax.f32 %v1335, 0.0
      %v1545 = vmax.f32 %v1339, 0.0
      %v1546 = vmax.f32 %v1341, 0.0
      %v1547 = vmax.f32 %v1345, 0.0
      %v1548 = vmax.f32 %v1347, 0.0
      %v1549 = vmax.f32 %v1351, 0.0
      %v1550 = vmax.f32 %v1353, 0.0
      %v1551 = vmax.f32 %v1357, 0.0
      %v1552 = vmax.f32 %v1359, 0.0
      %v1553 = vmax.f32 %v1363, 0.0
      %v1554 = vmax.f32 %v1365, 0.0
      %v1555 = vmax.f32 %v1369, 0.0
      %v1556 = vmax.f32 %v1371, 0.0
      %v1557 = vmax.f32 %v1375, 0.0
      %v1558 = vmax.f32 %v1377, 0.0
      %v1559 = vmax.f32 %v1381, 0.0
      %v1560 = vmax.f32 %v1383, 0.0
      %v1561 = vmax.f32 %v1387, 0.0
      %v1562 = vmax.f32 %v1389, 0.0
      %v1563 = vmax.f32 %v1393, 0.0
      %v1564 = vmax.f32 %v1395, 0.0
      %v1565 = vmax.f32 %v1399, 0.0
      %v1566 = vmax.f32 %v1401, 0.0
      %v1567 = vmax.f32 %v1405, 0.0
      %v1568 = vmax.f32 %v1407, 0.0
      %v1569 = vmax.f32 %v1411, 0.0
      %v1570 = vmax.f32 %v1413, 0.0
      %v1571 = vmax.f32 %v1417, 0.0
      %v1572 = vmax.f32 %v1419, 0.0
      %v1573 = vmax.f32 %v1423, 0.0
      %v1574 = vmax.f32 %v1425, 0.0
      %v1575 = vmax.f32 %v1429, 0.0
      %v1576 = vmax.f32 %v1431, 0.0
      %v1577 = vmax.f32 %v1435, 0.0
      %v1578 = vmax.f32 %v1437, 0.0
      %v1579 = vmax.f32 %v1441, 0.0
      %v1580 = vmax.f32 %v1443, 0.0
      %v1581 = vmax.f32 %v1447, 0.0
      %v1582 = vmax.f32 %v1449, 0.0
      %v1583 = vmax.f32 %v1453, 0.0
      %v1584 = vmax.f32 %v1455, 0.0
      %v1585 = vmax.f32 %v1459, 0.0
      %v1586 = vmax.f32 %v1461, 0.0
      %v1587 = vmax.f32 %v1465, 0.0
      %v1588 = vmax.f32 %v1467, 0.0
      %v1589 = vmax.f32 %v1471, 0.0
      %v1590 = vmax.f32 %v1473, 0.0
      %v1591 = vmax.f32 %v1477, 0.0
      %v1592 = vmax.f32 %v1479, 0.0
      %v1593 = vmax.f32 %v1483, 0.0
      %v1594 = vmax.f32 %v1485, 0.0
      %v1595 = vmax.f32 %v1489, 0.0
      %v1596 = vmax.f32 %v1491, 0.0
      %v1597 = vmax.f32 %v1495, 0.0
      %v1598 = vmax.f32 %v1497, 0.0
      %v1599 = vmax.f32 %v1501, 0.0
      %v1600 = vmax.f32 %v1503, 0.0
      %1601 = vst [vmem:[#allocation9] sm:$0xff] %v1505
      %1602 = vst [vmem:[#allocation9 + $0x8] sm:$0xff] %v1506
      %1603 = vst [vmem:[#allocation9 + $0x10] sm:$0xff] %v1507
      %1604 = vst [vmem:[#allocation9 + $0x18] sm:$0xff] %v1508
      %1605 = vst [vmem:[#allocation9 + $0x20] sm:$0xff] %v1509
      %1606 = vst [vmem:[#allocation9 + $0x28] sm:$0xff] %v1510
      %1607 = vst [vmem:[#allocation9 + $0x30] sm:$0xff] %v1511
      %1608 = vst [vmem:[#allocation9 + $0x38] sm:$0xff] %v1512
      %1609 = vst [vmem:[#allocation9 + $0x40] sm:$0xff] %v1513
      %1610 = vst [vmem:[#allocation9 + $0x48] sm:$0xff] %v1514
      %1611 = vst [vmem:[#allocation9 + $0x50] sm:$0xff] %v1515
      %1612 = vst [vmem:[#allocation9 + $0x58] sm:$0xff] %v1516
      %1613 = vst [vmem:[#allocation9 + $0x60] sm:$0xff] %v1517
      %1614 = vst [vmem:[#allocation9 + $0x68] sm:$0xff] %v1518
      %1615 = vst [vmem:[#allocation9 + $0x70] sm:$0xff] %v1519
      %1616 = vst [vmem:[#allocation9 + $0x78] sm:$0xff] %v1520
      %1617 = vst [vmem:[#allocation9 + $0x80] sm:$0xff] %v1521
      %1618 = vst [vmem:[#allocation9 + $0x88] sm:$0xff] %v1522
      %1619 = vst [vmem:[#allocation9 + $0x90] sm:$0xff] %v1523
      %1620 = vst [vmem:[#allocation9 + $0x98] sm:$0xff] %v1524
      %1621 = vst [vmem:[#allocation9 + $0xa0] sm:$0xff] %v1525
      %1622 = vst [vmem:[#allocation9 + $0xa8] sm:$0xff] %v1526
      %1623 = vst [vmem:[#allocation9 + $0xb0] sm:$0xff] %v1527
      %1624 = vst [vmem:[#allocation9 + $0xb8] sm:$0xff] %v1528
      %1625 = vst [vmem:[#allocation9 + $0xc0] sm:$0xff] %v1529
      %1626 = vst [vmem:[#allocation9 + $0xc8] sm:$0xff] %v1530
      %1627 = vst [vmem:[#allocation9 + $0xd0] sm:$0xff] %v1531
      %1628 = vst [vmem:[#allocation9 + $0xd8] sm:$0xff] %v1532
      %1629 = vst [vmem:[#allocation9 + $0xe0] sm:$0xff] %v1533
      %1630 = vst [vmem:[#allocation9 + $0xe8] sm:$0xff] %v1534
      %1631 = vst [vmem:[#allocation9 + $0xf0] sm:$0xff] %v1535
      %1632 = vst [vmem:[#allocation9 + $0xf8] sm:$0xff] %v1536
      %1633 = vst [vmem:[#allocation9 + $0x100] sm:$0xff] %v1537
      %1634 = vst [vmem:[#allocation9 + $0x108] sm:$0xff] %v1538
      %1635 = vst [vmem:[#allocation9 + $0x110] sm:$0xff] %v1539
      %1636 = vst [vmem:[#allocation9 + $0x118] sm:$0xff] %v1540
      %1637 = vst [vmem:[#allocation9 + $0x120] sm:$0xff] %v1541
      %1638 = vst [vmem:[#allocation9 + $0x128] sm:$0xff] %v1542
      %1639 = vst [vmem:[#allocation9 + $0x130] sm:$0xff] %v1543
      %1640 = vst [vmem:[#allocation9 + $0x138] sm:$0xff] %v1544
      %1641 = vst [vmem:[#allocation9 + $0x140] sm:$0xff] %v1545
      %1642 = vst [vmem:[#allocation9 + $0x148] sm:$0xff] %v1546
      %1643 = vst [vmem:[#allocation9 + $0x150] sm:$0xff] %v1547
      %1644 = vst [vmem:[#allocation9 + $0x158] sm:$0xff] %v1548
      %1645 = vst [vmem:[#allocation9 + $0x160] sm:$0xff] %v1549
      %1646 = vst [vmem:[#allocation9 + $0x168] sm:$0xff] %v1550
      %1647 = vst [vmem:[#allocation9 + $0x170] sm:$0xff] %v1551
      %1648 = vst [vmem:[#allocation9 + $0x178] sm:$0xff] %v1552
      %1649 = vst [vmem:[#allocation9 + $0x180] sm:$0xff] %v1553
      %1650 = vst [vmem:[#allocation9 + $0x188] sm:$0xff] %v1554
      %1651 = vst [vmem:[#allocation9 + $0x190] sm:$0xff] %v1555
      %1652 = vst [vmem:[#allocation9 + $0x198] sm:$0xff] %v1556
      %1653 = vst [vmem:[#allocation9 + $0x1a0] sm:$0xff] %v1557
      %1654 = vst [vmem:[#allocation9 + $0x1a8] sm:$0xff] %v1558
      %1655 = vst [vmem:[#allocation9 + $0x1b0] sm:$0xff] %v1559
      %1656 = vst [vmem:[#allocation9 + $0x1b8] sm:$0xff] %v1560
      %1657 = vst [vmem:[#allocation9 + $0x1c0] sm:$0xff] %v1561
      %1658 = vst [vmem:[#allocation9 + $0x1c8] sm:$0xff] %v1562
      %1659 = vst [vmem:[#allocation9 + $0x1d0] sm:$0xff] %v1563
      %1660 = vst [vmem:[#allocation9 + $0x1d8] sm:$0xff] %v1564
      %1661 = vst [vmem:[#allocation9 + $0x1e0] sm:$0xff] %v1565
      %1662 = vst [vmem:[#allocation9 + $0x1e8] sm:$0xff] %v1566
      %1663 = vst [vmem:[#allocation9 + $0x1f0] sm:$0xff] %v1567
      %1664 = vst [vmem:[#allocation9 + $0x1f8] sm:$0xff] %v1568
      %1665 = vst [vmem:[#allocation9 + $0x200] sm:$0xff] %v1569
      %1666 = vst [vmem:[#allocation9 + $0x208] sm:$0xff] %v1570
      %1667 = vst [vmem:[#allocation9 + $0x210] sm:$0xff] %v1571
      %1668 = vst [vmem:[#allocation9 + $0x218] sm:$0xff] %v1572
      %1669 = vst [vmem:[#allocation9 + $0x220] sm:$0xff] %v1573
      %1670 = vst [vmem:[#allocation9 + $0x228] sm:$0xff] %v1574
      %1671 = vst [vmem:[#allocation9 + $0x230] sm:$0xff] %v1575
      %1672 = vst [vmem:[#allocation9 + $0x238] sm:$0xff] %v1576
      %1673 = vst [vmem:[#allocation9 + $0x240] sm:$0xff] %v1577
      %1674 = vst [vmem:[#allocation9 + $0x248] sm:$0xff] %v1578
      %1675 = vst [vmem:[#allocation9 + $0x250] sm:$0xff] %v1579
      %1676 = vst [vmem:[#allocation9 + $0x258] sm:$0xff] %v1580
      %1677 = vst [vmem:[#allocation9 + $0x260] sm:$0xff] %v1581
      %1678 = vst [vmem:[#allocation9 + $0x268] sm:$0xff] %v1582
      %1679 = vst [vmem:[#allocation9 + $0x270] sm:$0xff] %v1583
      %1680 = vst [vmem:[#allocation9 + $0x278] sm:$0xff] %v1584
      %1681 = vst [vmem:[#allocation9 + $0x280] sm:$0xff] %v1585
      %1682 = vst [vmem:[#allocation9 + $0x288] sm:$0xff] %v1586
      %1683 = vst [vmem:[#allocation9 + $0x290] sm:$0xff] %v1587
      %1684 = vst [vmem:[#allocation9 + $0x298] sm:$0xff] %v1588
      %1685 = vst [vmem:[#allocation9 + $0x2a0] sm:$0xff] %v1589
      %1686 = vst [vmem:[#allocation9 + $0x2a8] sm:$0xff] %v1590
      %1687 = vst [vmem:[#allocation9 + $0x2b0] sm:$0xff] %v1591
      %1688 = vst [vmem:[#allocation9 + $0x2b8] sm:$0xff] %v1592
      %1689 = vst [vmem:[#allocation9 + $0x2c0] sm:$0xff] %v1593
      %1690 = vst [vmem:[#allocation9 + $0x2c8] sm:$0xff] %v1594
      %1691 = vst [vmem:[#allocation9 + $0x2d0] sm:$0xff] %v1595
      %1692 = vst [vmem:[#allocation9 + $0x2d8] sm:$0xff] %v1596
      %1693 = vst [vmem:[#allocation9 + $0x2e0] sm:$0xff] %v1597
      %1694 = vst [vmem:[#allocation9 + $0x2e8] sm:$0xff] %v1598
      %1695 = vst [vmem:[#allocation9 + $0x2f0] sm:$0xff] %v1599
      %1696 = vst [vmem:[#allocation9 + $0x2f8] sm:$0xff] %v1600
    $region37: #{tpu_custom_call.1} parent=1 // pred_fallthru
      _
    // Predicated region
    $region38: #{tpu_custom_call.1} parent=1 // pred_check
      _
    $region39: #{tpu_custom_call.1} parent=1 // pred_check_branch
      %1698 = sbr.rel (0) target = $region41
    $region40: #{tpu_custom_call.1} parent=1 // pred_region
      %s1700 = ssub.s32 12288, 12288
      %1701 = vsyncadd [#allocation5], %s1700
      %s1702 = sshll.u32 [#allocation9], 4
      %s1703 = int_to_ptr.vmem [resolvable:$true] %s1702
      %1708 = dma.vmem_to_hbm [thread:$0]  %s1703, 12288, %s4, [#allocation5], 256, 256, 16
    $region41: #{tpu_custom_call.1} parent=1 // pred_fallthru
      _
    // Predicated region
    $region42: #{tpu_custom_call.1} parent=1 // pred_check
      _
    $region43: #{tpu_custom_call.1} parent=1 // pred_check_branch
      %1710 = sbr.rel (0) target = $region45
    $region44: #{tpu_custom_call.1} parent=1 // pred_region
      %1711 = dma.done [#allocation5], 12288
    $region45: #{tpu_custom_call.1} parent=1 // pred_fallthru
      _
    %1712 = vsyncpa [#allocation4], 1
    %1713 = vsyncpa [#allocation7], 1
    %1714 = vsyncpa [#allocation5], 1

</llo_original>
